<compile_context>
chip_gen: v7x
topology: tpu7x:2x2x1
jax: 0.10.0
libtpu: 0.0.40
codegen_flags: <defaults>
</compile_context>

<pallas_src>
import jax
import jax.numpy as jnp
from jax.experimental import pallas as pl
from jax.experimental.pallas import tpu as pltpu

H_REAL = 100     # module hidden_size
H_PAD = 128      # lane-aligned padded hidden size


def lstm_kernel(seq_ref, wih_ref, whh_ref, b_ref, wlin_ref, blin_ref, out_ref):
    """Refs:
      seq_ref  : (L,)          f32  SMEM   input sequence (scalar reads per step)
      wih_ref  : (1, 4*Hp)     f32  VMEM   fused input->hidden weights, gate order [i,f,o,g]
      whh_ref  : (Hp, 4*Hp)    bf16 VMEM   fused hidden->hidden weights (pad rows/cols zero)
      b_ref    : (1, 4*Hp)     f32  VMEM   fused bias (b_ih + b_hh), pad lanes zero
      wlin_ref : (1, Hp)       f32  VMEM   final linear weight row, pad lanes zero
      blin_ref : (1, 1)        f32  VMEM
      out_ref  : (1, 1)        f32  VMEM   pred[-1]
    """
    L = seq_ref.shape[0]
    Hp = whh_ref.shape[0]

    def gate_update(pre, c):
        # Gates packed [ i | f | o | g ]: one contiguous sigmoid slab, one tanh slab.
        z = pre[:, :3 * Hp]
        sig = pl.reciprocal(1.0 + jnp.exp(-z), approx=True)   # EUP vrcp, off-VALU
        i_g = sig[:, 0:Hp]
        f_g = sig[:, Hp:2 * Hp]
        o_g = sig[:, 2 * Hp:3 * Hp]
        g_g = jnp.tanh(pre[:, 3 * Hp:])
        c_new = f_g * c + i_g * g_g
        h_new = o_g * jnp.tanh(c_new)
        return h_new, c_new

    # ---- t = 0: h == 0, so the hidden->hidden matmul is skipped entirely. ----
    pre0 = seq_ref[0] * wih_ref[...] + b_ref[...]          # scalar-broadcast VPU op
    h, c = gate_update(pre0, jnp.zeros((1, Hp), jnp.float32))

    # ---- t = 1 .. L-1: fully unrolled recurrence. ----
    for t in range(1, L):
        # Input contribution from SMEM scalar: independent of h, overlaps with the
        # matmul; no sublane row extraction, no (L,4Hp) slab kept live.
        xb = seq_ref[t] * wih_ref[...] + b_ref[...]
        # whh_ref[...] referenced at the use site (not hoisted) so the 32-vreg bf16
        # weight is not pinned live across the entire unrolled body.
        pre = xb + jnp.dot(h.astype(jnp.bfloat16), whh_ref[...],
                           preferred_element_type=jnp.float32)
        h, c = gate_update(pre, c)

    # Final linear on the last hidden state via VPU mul + lane reduce (== pred[-1]).
    out_ref[...] = (jnp.sum(h * wlin_ref[...], axis=-1, keepdims=True)
                    + blin_ref[...])


def lstm_network_forward(seq, packed_params):
    """seq: (L,) f32. Returns (1,) == pred[-1] of the PyTorch module."""
    wih, whh, b, wlin, blin = packed_params
    seq1d = seq.astype(jnp.float32)

    out = pl.pallas_call(
        lstm_kernel,
        out_shape=jax.ShapeDtypeStruct((1, 1), jnp.float32),
        in_specs=[
            pl.BlockSpec(memory_space=pltpu.MemorySpace.SMEM),   # seq   (L,)   f32
            pl.BlockSpec(memory_space=pltpu.MemorySpace.VMEM),   # wih   (1,4Hp)
            pl.BlockSpec(memory_space=pltpu.MemorySpace.VMEM),   # whh   (Hp,4Hp) bf16
            pl.BlockSpec(memory_space=pltpu.MemorySpace.VMEM),   # b     (1,4Hp)
            pl.BlockSpec(memory_space=pltpu.MemorySpace.VMEM),   # wlin  (1,Hp)
            pl.BlockSpec(memory_space=pltpu.MemorySpace.VMEM),   # blin  (1,1)
        ],
        out_specs=pl.BlockSpec(memory_space=pltpu.MemorySpace.VMEM),
        compiler_params=pltpu.CompilerParams(vmem_limit_bytes=4 << 20),
    )(seq1d, wih, whh, b, wlin, blin)
    return out.reshape((1,))


def init_raw_params(key, input_size=1, hidden_size=H_REAL, output_size=1):
    """Deterministic init mimicking PyTorch nn.LSTM / nn.Linear uniform(-k, k)."""
    H = hidden_size
    k = 1.0 / jnp.sqrt(jnp.float32(H))
    keys = jax.random.split(key, 6)
    W_ih = jax.random.uniform(keys[0], (4 * H, input_size), jnp.float32, -k, k)
    W_hh = jax.random.uniform(keys[1], (4 * H, H), jnp.float32, -k, k)
    b_ih = jax.random.uniform(keys[2], (4 * H,), jnp.float32, -k, k)
    b_hh = jax.random.uniform(keys[3], (4 * H,), jnp.float32, -k, k)
    W_lin = jax.random.uniform(keys[4], (output_size, H), jnp.float32, -k, k)
    b_lin = jax.random.uniform(keys[5], (output_size,), jnp.float32, -k, k)
    return W_ih, W_hh, b_ih, b_hh, W_lin, b_lin


def pack_params(raw, hidden_size=H_REAL, padded_hidden=H_PAD):
    """Repack PyTorch-layout weights into fused, padded, kernel-friendly layout.

    Kernel gate order is [i, f, o, g] -> PyTorch chunk indices (0, 1, 3, 2).
    Pad rows/cols/lanes are zero so the extra 28 lanes stay mathematically inert
    (c/h pads start at 0 and are only ever multiplied into).
    """
    W_ih, W_hh, b_ih, b_hh, W_lin, b_lin = raw
    H, Hp = hidden_size, padded_hidden
    order = (0, 1, 3, 2)
    bias = b_ih + b_hh

    wih = jnp.zeros((1, 4 * Hp), jnp.float32)
    whh = jnp.zeros((Hp, 4 * Hp), jnp.float32)
    b = jnp.zeros((1, 4 * Hp), jnp.float32)
    for s, gidx in enumerate(order):
        wih = wih.at[0, s * Hp:s * Hp + H].set(W_ih[gidx * H:(gidx + 1) * H, 0])
        whh = whh.at[:H, s * Hp:s * Hp + H].set(W_hh[gidx * H:(gidx + 1) * H, :].T)
        b = b.at[0, s * Hp:s * Hp + H].set(bias[gidx * H:(gidx + 1) * H])

    wlin = jnp.zeros((1, Hp), jnp.float32).at[0, :H].set(W_lin[0, :])
    blin = b_lin.reshape(1, 1)
    return wih, whh.astype(jnp.bfloat16), b, wlin, blin


def reference_forward(seq, raw_params, hidden_size=H_REAL):
    """Pure-JAX f32 reference reproducing the PyTorch forward (zero initial hidden)."""
    W_ih, W_hh, b_ih, b_hh, W_lin, b_lin = raw_params
    H = hidden_size
    h = jnp.zeros((1, H), jnp.float32)
    c = jnp.zeros((1, H), jnp.float32)
    for t in range(seq.shape[0]):
        x = seq[t].reshape(1, 1)
        gates = x @ W_ih.T + h @ W_hh.T + b_ih + b_hh
        i = jax.nn.sigmoid(gates[:, 0 * H:1 * H])
        f = jax.nn.sigmoid(gates[:, 1 * H:2 * H])
        g = jnp.tanh(gates[:, 2 * H:3 * H])
        o = jax.nn.sigmoid(gates[:, 3 * H:4 * H])
        c = f * c + i * g
        h = o * jnp.tanh(c)
    return (h @ W_lin.T + b_lin).reshape(-1)   # pred[-1]


if __name__ == "__main__":
    L = 8            # sequence length
    HIDDEN = H_REAL  # module default hidden_size (100)

    key = jax.random.PRNGKey(0)
    k_seq, k_par = jax.random.split(key)
    seq = jax.random.normal(k_seq, (L,), jnp.float32)

    raw = init_raw_params(k_par, input_size=1, hidden_size=HIDDEN, output_size=1)
    packed = pack_params(raw, hidden_size=HIDDEN, padded_hidden=H_PAD)

    pred = lstm_network_forward(seq, packed)
    pred = jax.block_until_ready(pred)

    ref = reference_forward(seq, raw, hidden_size=HIDDEN)
    assert pred.shape == (1,)
    # bf16 hidden->hidden weights + approx-reciprocal sigmoid (f32 accumulation
    # everywhere) -> slightly looser tolerance than pure f32.
    assert jnp.allclose(pred, ref, atol=3e-2, rtol=3e-2), (pred, ref)

    print("KERNEL_OK")
</pallas_src>

<mosaic_0001>
module attributes {stable_mosaic.version = 11 : i64} {
  func.func @lstm_kernel(%arg0: memref<8xf32, #tpu.memory_space<smem>>, %arg1: memref<1x512xf32, #tpu.memory_space<vmem>>, %arg2: memref<128x512xbf16, #tpu.memory_space<vmem>>, %arg3: memref<1x512xf32, #tpu.memory_space<vmem>>, %arg4: memref<1x128xf32, #tpu.memory_space<vmem>>, %arg5: memref<1x1xf32, #tpu.memory_space<vmem>>, %arg6: memref<1x1xf32, #tpu.memory_space<vmem>>) attributes {dimension_semantics = [], scalar_prefetch = 0 : i64, scratch_operands = 0 : i64, tpu.core_type = #tpu.core_type<tc>} {
    %c0 = arith.constant 0 : index
    %0 = memref.load %arg0[%c0] : memref<8xf32, #tpu.memory_space<smem>>
    %c0_0 = arith.constant 0 : index
    %c0_1 = arith.constant 0 : index
    %1 = vector.load %arg1[%c0_0, %c0_1] : memref<1x512xf32, #tpu.memory_space<vmem>>, vector<1x512xf32>
    %2 = vector.broadcast %0 : f32 to vector<1x512xf32>
    %3 = arith.mulf %2, %1 : vector<1x512xf32>
    %c0_2 = arith.constant 0 : index
    %c0_3 = arith.constant 0 : index
    %4 = vector.load %arg3[%c0_2, %c0_3] : memref<1x512xf32, #tpu.memory_space<vmem>>, vector<1x512xf32>
    %5 = arith.addf %3, %4 : vector<1x512xf32>
    %cst = arith.constant 0.000000e+00 : f32
    %6 = vector.broadcast %cst : f32 to vector<1x128xf32>
    %7 = vector.extract_strided_slice %5 {offsets = [0, 0], sizes = [1, 384], strides = [1, 1]} : vector<1x512xf32> to vector<1x384xf32>
    %cst_4 = arith.constant 0.000000e+00 : f32
    %8 = vector.broadcast %cst_4 : f32 to vector<1x384xf32>
    %9 = arith.subf %8, %7 : vector<1x384xf32>
    %10 = math.exp %9 : vector<1x384xf32>
    %cst_5 = arith.constant 1.000000e+00 : f32
    %11 = vector.broadcast %cst_5 : f32 to vector<1x384xf32>
    %12 = arith.addf %11, %10 : vector<1x384xf32>
    %13 = tpu.reciprocal %12 {approx = true} : vector<1x384xf32> -> vector<1x384xf32>
    %14 = vector.extract_strided_slice %13 {offsets = [0, 0], sizes = [1, 128], strides = [1, 1]} : vector<1x384xf32> to vector<1x128xf32>
    %15 = vector.extract_strided_slice %13 {offsets = [0, 128], sizes = [1, 128], strides = [1, 1]} : vector<1x384xf32> to vector<1x128xf32>
    %16 = vector.extract_strided_slice %13 {offsets = [0, 256], sizes = [1, 128], strides = [1, 1]} : vector<1x384xf32> to vector<1x128xf32>
    %17 = vector.extract_strided_slice %5 {offsets = [0, 384], sizes = [1, 128], strides = [1, 1]} : vector<1x512xf32> to vector<1x128xf32>
    %18 = math.tanh %17 : vector<1x128xf32>
    %19 = arith.mulf %15, %6 : vector<1x128xf32>
    %20 = arith.mulf %14, %18 : vector<1x128xf32>
    %21 = arith.addf %19, %20 : vector<1x128xf32>
    %22 = math.tanh %21 : vector<1x128xf32>
    %23 = arith.mulf %16, %22 : vector<1x128xf32>
    %c1 = arith.constant 1 : index
    %24 = memref.load %arg0[%c1] : memref<8xf32, #tpu.memory_space<smem>>
    %c0_6 = arith.constant 0 : index
    %c0_7 = arith.constant 0 : index
    %25 = vector.load %arg1[%c0_6, %c0_7] : memref<1x512xf32, #tpu.memory_space<vmem>>, vector<1x512xf32>
    %26 = vector.broadcast %24 : f32 to vector<1x512xf32>
    %27 = arith.mulf %26, %25 : vector<1x512xf32>
    %c0_8 = arith.constant 0 : index
    %c0_9 = arith.constant 0 : index
    %28 = vector.load %arg3[%c0_8, %c0_9] : memref<1x512xf32, #tpu.memory_space<vmem>>, vector<1x512xf32>
    %29 = arith.addf %27, %28 : vector<1x512xf32>
    %30 = arith.truncf %23 : vector<1x128xf32> to vector<1x128xbf16>
    %c0_10 = arith.constant 0 : index
    %c0_11 = arith.constant 0 : index
    %31 = vector.load %arg2[%c0_10, %c0_11] : memref<128x512xbf16, #tpu.memory_space<vmem>>, vector<128x512xbf16>
    %cst_12 = arith.constant dense<0.000000e+00> : vector<1x512xf32>
    %32 = tpu.matmul %30, %31, %cst_12 {dimension_numbers = #tpu.dot_dimension_numbers<[1], [0], [0], [1], [0, 0, 1, 1], [], []>} : vector<1x128xbf16>, vector<128x512xbf16>, vector<1x512xf32> -> vector<1x512xf32>
    %33 = arith.addf %29, %32 : vector<1x512xf32>
    %34 = vector.extract_strided_slice %33 {offsets = [0, 0], sizes = [1, 384], strides = [1, 1]} : vector<1x512xf32> to vector<1x384xf32>
    %cst_13 = arith.constant 0.000000e+00 : f32
    %35 = vector.broadcast %cst_13 : f32 to vector<1x384xf32>
    %36 = arith.subf %35, %34 : vector<1x384xf32>
    %37 = math.exp %36 : vector<1x384xf32>
    %cst_14 = arith.constant 1.000000e+00 : f32
    %38 = vector.broadcast %cst_14 : f32 to vector<1x384xf32>
    %39 = arith.addf %38, %37 : vector<1x384xf32>
    %40 = tpu.reciprocal %39 {approx = true} : vector<1x384xf32> -> vector<1x384xf32>
    %41 = vector.extract_strided_slice %40 {offsets = [0, 0], sizes = [1, 128], strides = [1, 1]} : vector<1x384xf32> to vector<1x128xf32>
    %42 = vector.extract_strided_slice %40 {offsets = [0, 128], sizes = [1, 128], strides = [1, 1]} : vector<1x384xf32> to vector<1x128xf32>
    %43 = vector.extract_strided_slice %40 {offsets = [0, 256], sizes = [1, 128], strides = [1, 1]} : vector<1x384xf32> to vector<1x128xf32>
    %44 = vector.extract_strided_slice %33 {offsets = [0, 384], sizes = [1, 128], strides = [1, 1]} : vector<1x512xf32> to vector<1x128xf32>
    %45 = math.tanh %44 : vector<1x128xf32>
    %46 = arith.mulf %42, %21 : vector<1x128xf32>
    %47 = arith.mulf %41, %45 : vector<1x128xf32>
    %48 = arith.addf %46, %47 : vector<1x128xf32>
    %49 = math.tanh %48 : vector<1x128xf32>
    %50 = arith.mulf %43, %49 : vector<1x128xf32>
    %c2 = arith.constant 2 : index
    %51 = memref.load %arg0[%c2] : memref<8xf32, #tpu.memory_space<smem>>
    %c0_15 = arith.constant 0 : index
    %c0_16 = arith.constant 0 : index
    %52 = vector.load %arg1[%c0_15, %c0_16] : memref<1x512xf32, #tpu.memory_space<vmem>>, vector<1x512xf32>
    %53 = vector.broadcast %51 : f32 to vector<1x512xf32>
    %54 = arith.mulf %53, %52 : vector<1x512xf32>
    %c0_17 = arith.constant 0 : index
    %c0_18 = arith.constant 0 : index
    %55 = vector.load %arg3[%c0_17, %c0_18] : memref<1x512xf32, #tpu.memory_space<vmem>>, vector<1x512xf32>
    %56 = arith.addf %54, %55 : vector<1x512xf32>
    %57 = arith.truncf %50 : vector<1x128xf32> to vector<1x128xbf16>
    %c0_19 = arith.constant 0 : index
    %c0_20 = arith.constant 0 : index
    %58 = vector.load %arg2[%c0_19, %c0_20] : memref<128x512xbf16, #tpu.memory_space<vmem>>, vector<128x512xbf16>
    %cst_21 = arith.constant dense<0.000000e+00> : vector<1x512xf32>
    %59 = tpu.matmul %57, %58, %cst_21 {dimension_numbers = #tpu.dot_dimension_numbers<[1], [0], [0], [1], [0, 0, 1, 1], [], []>} : vector<1x128xbf16>, vector<128x512xbf16>, vector<1x512xf32> -> vector<1x512xf32>
    %60 = arith.addf %56, %59 : vector<1x512xf32>
    %61 = vector.extract_strided_slice %60 {offsets = [0, 0], sizes = [1, 384], strides = [1, 1]} : vector<1x512xf32> to vector<1x384xf32>
    %cst_22 = arith.constant 0.000000e+00 : f32
    %62 = vector.broadcast %cst_22 : f32 to vector<1x384xf32>
    %63 = arith.subf %62, %61 : vector<1x384xf32>
    %64 = math.exp %63 : vector<1x384xf32>
    %cst_23 = arith.constant 1.000000e+00 : f32
    %65 = vector.broadcast %cst_23 : f32 to vector<1x384xf32>
    %66 = arith.addf %65, %64 : vector<1x384xf32>
    %67 = tpu.reciprocal %66 {approx = true} : vector<1x384xf32> -> vector<1x384xf32>
    %68 = vector.extract_strided_slice %67 {offsets = [0, 0], sizes = [1, 128], strides = [1, 1]} : vector<1x384xf32> to vector<1x128xf32>
    %69 = vector.extract_strided_slice %67 {offsets = [0, 128], sizes = [1, 128], strides = [1, 1]} : vector<1x384xf32> to vector<1x128xf32>
    %70 = vector.extract_strided_slice %67 {offsets = [0, 256], sizes = [1, 128], strides = [1, 1]} : vector<1x384xf32> to vector<1x128xf32>
    %71 = vector.extract_strided_slice %60 {offsets = [0, 384], sizes = [1, 128], strides = [1, 1]} : vector<1x512xf32> to vector<1x128xf32>
    %72 = math.tanh %71 : vector<1x128xf32>
    %73 = arith.mulf %69, %48 : vector<1x128xf32>
    %74 = arith.mulf %68, %72 : vector<1x128xf32>
    %75 = arith.addf %73, %74 : vector<1x128xf32>
    %76 = math.tanh %75 : vector<1x128xf32>
    %77 = arith.mulf %70, %76 : vector<1x128xf32>
    %c3 = arith.constant 3 : index
    %78 = memref.load %arg0[%c3] : memref<8xf32, #tpu.memory_space<smem>>
    %c0_24 = arith.constant 0 : index
    %c0_25 = arith.constant 0 : index
    %79 = vector.load %arg1[%c0_24, %c0_25] : memref<1x512xf32, #tpu.memory_space<vmem>>, vector<1x512xf32>
    %80 = vector.broadcast %78 : f32 to vector<1x512xf32>
    %81 = arith.mulf %80, %79 : vector<1x512xf32>
    %c0_26 = arith.constant 0 : index
    %c0_27 = arith.constant 0 : index
    %82 = vector.load %arg3[%c0_26, %c0_27] : memref<1x512xf32, #tpu.memory_space<vmem>>, vector<1x512xf32>
    %83 = arith.addf %81, %82 : vector<1x512xf32>
    %84 = arith.truncf %77 : vector<1x128xf32> to vector<1x128xbf16>
    %c0_28 = arith.constant 0 : index
    %c0_29 = arith.constant 0 : index
    %85 = vector.load %arg2[%c0_28, %c0_29] : memref<128x512xbf16, #tpu.memory_space<vmem>>, vector<128x512xbf16>
    %cst_30 = arith.constant dense<0.000000e+00> : vector<1x512xf32>
    %86 = tpu.matmul %84, %85, %cst_30 {dimension_numbers = #tpu.dot_dimension_numbers<[1], [0], [0], [1], [0, 0, 1, 1], [], []>} : vector<1x128xbf16>, vector<128x512xbf16>, vector<1x512xf32> -> vector<1x512xf32>
    %87 = arith.addf %83, %86 : vector<1x512xf32>
    %88 = vector.extract_strided_slice %87 {offsets = [0, 0], sizes = [1, 384], strides = [1, 1]} : vector<1x512xf32> to vector<1x384xf32>
    %cst_31 = arith.constant 0.000000e+00 : f32
    %89 = vector.broadcast %cst_31 : f32 to vector<1x384xf32>
    %90 = arith.subf %89, %88 : vector<1x384xf32>
    %91 = math.exp %90 : vector<1x384xf32>
    %cst_32 = arith.constant 1.000000e+00 : f32
    %92 = vector.broadcast %cst_32 : f32 to vector<1x384xf32>
    %93 = arith.addf %92, %91 : vector<1x384xf32>
    %94 = tpu.reciprocal %93 {approx = true} : vector<1x384xf32> -> vector<1x384xf32>
    %95 = vector.extract_strided_slice %94 {offsets = [0, 0], sizes = [1, 128], strides = [1, 1]} : vector<1x384xf32> to vector<1x128xf32>
    %96 = vector.extract_strided_slice %94 {offsets = [0, 128], sizes = [1, 128], strides = [1, 1]} : vector<1x384xf32> to vector<1x128xf32>
    %97 = vector.extract_strided_slice %94 {offsets = [0, 256], sizes = [1, 128], strides = [1, 1]} : vector<1x384xf32> to vector<1x128xf32>
    %98 = vector.extract_strided_slice %87 {offsets = [0, 384], sizes = [1, 128], strides = [1, 1]} : vector<1x512xf32> to vector<1x128xf32>
    %99 = math.tanh %98 : vector<1x128xf32>
    %100 = arith.mulf %96, %75 : vector<1x128xf32>
    %101 = arith.mulf %95, %99 : vector<1x128xf32>
    %102 = arith.addf %100, %101 : vector<1x128xf32>
    %103 = math.tanh %102 : vector<1x128xf32>
    %104 = arith.mulf %97, %103 : vector<1x128xf32>
    %c4 = arith.constant 4 : index
    %105 = memref.load %arg0[%c4] : memref<8xf32, #tpu.memory_space<smem>>
    %c0_33 = arith.constant 0 : index
    %c0_34 = arith.constant 0 : index
    %106 = vector.load %arg1[%c0_33, %c0_34] : memref<1x512xf32, #tpu.memory_space<vmem>>, vector<1x512xf32>
    %107 = vector.broadcast %105 : f32 to vector<1x512xf32>
    %108 = arith.mulf %107, %106 : vector<1x512xf32>
    %c0_35 = arith.constant 0 : index
    %c0_36 = arith.constant 0 : index
    %109 = vector.load %arg3[%c0_35, %c0_36] : memref<1x512xf32, #tpu.memory_space<vmem>>, vector<1x512xf32>
    %110 = arith.addf %108, %109 : vector<1x512xf32>
    %111 = arith.truncf %104 : vector<1x128xf32> to vector<1x128xbf16>
    %c0_37 = arith.constant 0 : index
    %c0_38 = arith.constant 0 : index
    %112 = vector.load %arg2[%c0_37, %c0_38] : memref<128x512xbf16, #tpu.memory_space<vmem>>, vector<128x512xbf16>
    %cst_39 = arith.constant dense<0.000000e+00> : vector<1x512xf32>
    %113 = tpu.matmul %111, %112, %cst_39 {dimension_numbers = #tpu.dot_dimension_numbers<[1], [0], [0], [1], [0, 0, 1, 1], [], []>} : vector<1x128xbf16>, vector<128x512xbf16>, vector<1x512xf32> -> vector<1x512xf32>
    %114 = arith.addf %110, %113 : vector<1x512xf32>
    %115 = vector.extract_strided_slice %114 {offsets = [0, 0], sizes = [1, 384], strides = [1, 1]} : vector<1x512xf32> to vector<1x384xf32>
    %cst_40 = arith.constant 0.000000e+00 : f32
    %116 = vector.broadcast %cst_40 : f32 to vector<1x384xf32>
    %117 = arith.subf %116, %115 : vector<1x384xf32>
    %118 = math.exp %117 : vector<1x384xf32>
    %cst_41 = arith.constant 1.000000e+00 : f32
    %119 = vector.broadcast %cst_41 : f32 to vector<1x384xf32>
    %120 = arith.addf %119, %118 : vector<1x384xf32>
    %121 = tpu.reciprocal %120 {approx = true} : vector<1x384xf32> -> vector<1x384xf32>
    %122 = vector.extract_strided_slice %121 {offsets = [0, 0], sizes = [1, 128], strides = [1, 1]} : vector<1x384xf32> to vector<1x128xf32>
    %123 = vector.extract_strided_slice %121 {offsets = [0, 128], sizes = [1, 128], strides = [1, 1]} : vector<1x384xf32> to vector<1x128xf32>
    %124 = vector.extract_strided_slice %121 {offsets = [0, 256], sizes = [1, 128], strides = [1, 1]} : vector<1x384xf32> to vector<1x128xf32>
    %125 = vector.extract_strided_slice %114 {offsets = [0, 384], sizes = [1, 128], strides = [1, 1]} : vector<1x512xf32> to vector<1x128xf32>
    %126 = math.tanh %125 : vector<1x128xf32>
    %127 = arith.mulf %123, %102 : vector<1x128xf32>
    %128 = arith.mulf %122, %126 : vector<1x128xf32>
    %129 = arith.addf %127, %128 : vector<1x128xf32>
    %130 = math.tanh %129 : vector<1x128xf32>
    %131 = arith.mulf %124, %130 : vector<1x128xf32>
    %c5 = arith.constant 5 : index
    %132 = memref.load %arg0[%c5] : memref<8xf32, #tpu.memory_space<smem>>
    %c0_42 = arith.constant 0 : index
    %c0_43 = arith.constant 0 : index
    %133 = vector.load %arg1[%c0_42, %c0_43] : memref<1x512xf32, #tpu.memory_space<vmem>>, vector<1x512xf32>
    %134 = vector.broadcast %132 : f32 to vector<1x512xf32>
    %135 = arith.mulf %134, %133 : vector<1x512xf32>
    %c0_44 = arith.constant 0 : index
    %c0_45 = arith.constant 0 : index
    %136 = vector.load %arg3[%c0_44, %c0_45] : memref<1x512xf32, #tpu.memory_space<vmem>>, vector<1x512xf32>
    %137 = arith.addf %135, %136 : vector<1x512xf32>
    %138 = arith.truncf %131 : vector<1x128xf32> to vector<1x128xbf16>
    %c0_46 = arith.constant 0 : index
    %c0_47 = arith.constant 0 : index
    %139 = vector.load %arg2[%c0_46, %c0_47] : memref<128x512xbf16, #tpu.memory_space<vmem>>, vector<128x512xbf16>
    %cst_48 = arith.constant dense<0.000000e+00> : vector<1x512xf32>
    %140 = tpu.matmul %138, %139, %cst_48 {dimension_numbers = #tpu.dot_dimension_numbers<[1], [0], [0], [1], [0, 0, 1, 1], [], []>} : vector<1x128xbf16>, vector<128x512xbf16>, vector<1x512xf32> -> vector<1x512xf32>
    %141 = arith.addf %137, %140 : vector<1x512xf32>
    %142 = vector.extract_strided_slice %141 {offsets = [0, 0], sizes = [1, 384], strides = [1, 1]} : vector<1x512xf32> to vector<1x384xf32>
    %cst_49 = arith.constant 0.000000e+00 : f32
    %143 = vector.broadcast %cst_49 : f32 to vector<1x384xf32>
    %144 = arith.subf %143, %142 : vector<1x384xf32>
    %145 = math.exp %144 : vector<1x384xf32>
    %cst_50 = arith.constant 1.000000e+00 : f32
    %146 = vector.broadcast %cst_50 : f32 to vector<1x384xf32>
    %147 = arith.addf %146, %145 : vector<1x384xf32>
    %148 = tpu.reciprocal %147 {approx = true} : vector<1x384xf32> -> vector<1x384xf32>
    %149 = vector.extract_strided_slice %148 {offsets = [0, 0], sizes = [1, 128], strides = [1, 1]} : vector<1x384xf32> to vector<1x128xf32>
    %150 = vector.extract_strided_slice %148 {offsets = [0, 128], sizes = [1, 128], strides = [1, 1]} : vector<1x384xf32> to vector<1x128xf32>
    %151 = vector.extract_strided_slice %148 {offsets = [0, 256], sizes = [1, 128], strides = [1, 1]} : vector<1x384xf32> to vector<1x128xf32>
    %152 = vector.extract_strided_slice %141 {offsets = [0, 384], sizes = [1, 128], strides = [1, 1]} : vector<1x512xf32> to vector<1x128xf32>
    %153 = math.tanh %152 : vector<1x128xf32>
    %154 = arith.mulf %150, %129 : vector<1x128xf32>
    %155 = arith.mulf %149, %153 : vector<1x128xf32>
    %156 = arith.addf %154, %155 : vector<1x128xf32>
    %157 = math.tanh %156 : vector<1x128xf32>
    %158 = arith.mulf %151, %157 : vector<1x128xf32>
    %c6 = arith.constant 6 : index
    %159 = memref.load %arg0[%c6] : memref<8xf32, #tpu.memory_space<smem>>
    %c0_51 = arith.constant 0 : index
    %c0_52 = arith.constant 0 : index
    %160 = vector.load %arg1[%c0_51, %c0_52] : memref<1x512xf32, #tpu.memory_space<vmem>>, vector<1x512xf32>
    %161 = vector.broadcast %159 : f32 to vector<1x512xf32>
    %162 = arith.mulf %161, %160 : vector<1x512xf32>
    %c0_53 = arith.constant 0 : index
    %c0_54 = arith.constant 0 : index
    %163 = vector.load %arg3[%c0_53, %c0_54] : memref<1x512xf32, #tpu.memory_space<vmem>>, vector<1x512xf32>
    %164 = arith.addf %162, %163 : vector<1x512xf32>
    %165 = arith.truncf %158 : vector<1x128xf32> to vector<1x128xbf16>
    %c0_55 = arith.constant 0 : index
    %c0_56 = arith.constant 0 : index
    %166 = vector.load %arg2[%c0_55, %c0_56] : memref<128x512xbf16, #tpu.memory_space<vmem>>, vector<128x512xbf16>
    %cst_57 = arith.constant dense<0.000000e+00> : vector<1x512xf32>
    %167 = tpu.matmul %165, %166, %cst_57 {dimension_numbers = #tpu.dot_dimension_numbers<[1], [0], [0], [1], [0, 0, 1, 1], [], []>} : vector<1x128xbf16>, vector<128x512xbf16>, vector<1x512xf32> -> vector<1x512xf32>
    %168 = arith.addf %164, %167 : vector<1x512xf32>
    %169 = vector.extract_strided_slice %168 {offsets = [0, 0], sizes = [1, 384], strides = [1, 1]} : vector<1x512xf32> to vector<1x384xf32>
    %cst_58 = arith.constant 0.000000e+00 : f32
    %170 = vector.broadcast %cst_58 : f32 to vector<1x384xf32>
    %171 = arith.subf %170, %169 : vector<1x384xf32>
    %172 = math.exp %171 : vector<1x384xf32>
    %cst_59 = arith.constant 1.000000e+00 : f32
    %173 = vector.broadcast %cst_59 : f32 to vector<1x384xf32>
    %174 = arith.addf %173, %172 : vector<1x384xf32>
    %175 = tpu.reciprocal %174 {approx = true} : vector<1x384xf32> -> vector<1x384xf32>
    %176 = vector.extract_strided_slice %175 {offsets = [0, 0], sizes = [1, 128], strides = [1, 1]} : vector<1x384xf32> to vector<1x128xf32>
    %177 = vector.extract_strided_slice %175 {offsets = [0, 128], sizes = [1, 128], strides = [1, 1]} : vector<1x384xf32> to vector<1x128xf32>
    %178 = vector.extract_strided_slice %175 {offsets = [0, 256], sizes = [1, 128], strides = [1, 1]} : vector<1x384xf32> to vector<1x128xf32>
    %179 = vector.extract_strided_slice %168 {offsets = [0, 384], sizes = [1, 128], strides = [1, 1]} : vector<1x512xf32> to vector<1x128xf32>
    %180 = math.tanh %179 : vector<1x128xf32>
    %181 = arith.mulf %177, %156 : vector<1x128xf32>
    %182 = arith.mulf %176, %180 : vector<1x128xf32>
    %183 = arith.addf %181, %182 : vector<1x128xf32>
    %184 = math.tanh %183 : vector<1x128xf32>
    %185 = arith.mulf %178, %184 : vector<1x128xf32>
    %c7 = arith.constant 7 : index
    %186 = memref.load %arg0[%c7] : memref<8xf32, #tpu.memory_space<smem>>
    %c0_60 = arith.constant 0 : index
    %c0_61 = arith.constant 0 : index
    %187 = vector.load %arg1[%c0_60, %c0_61] : memref<1x512xf32, #tpu.memory_space<vmem>>, vector<1x512xf32>
    %188 = vector.broadcast %186 : f32 to vector<1x512xf32>
    %189 = arith.mulf %188, %187 : vector<1x512xf32>
    %c0_62 = arith.constant 0 : index
    %c0_63 = arith.constant 0 : index
    %190 = vector.load %arg3[%c0_62, %c0_63] : memref<1x512xf32, #tpu.memory_space<vmem>>, vector<1x512xf32>
    %191 = arith.addf %189, %190 : vector<1x512xf32>
    %192 = arith.truncf %185 : vector<1x128xf32> to vector<1x128xbf16>
    %c0_64 = arith.constant 0 : index
    %c0_65 = arith.constant 0 : index
    %193 = vector.load %arg2[%c0_64, %c0_65] : memref<128x512xbf16, #tpu.memory_space<vmem>>, vector<128x512xbf16>
    %cst_66 = arith.constant dense<0.000000e+00> : vector<1x512xf32>
    %194 = tpu.matmul %192, %193, %cst_66 {dimension_numbers = #tpu.dot_dimension_numbers<[1], [0], [0], [1], [0, 0, 1, 1], [], []>} : vector<1x128xbf16>, vector<128x512xbf16>, vector<1x512xf32> -> vector<1x512xf32>
    %195 = arith.addf %191, %194 : vector<1x512xf32>
    %196 = vector.extract_strided_slice %195 {offsets = [0, 0], sizes = [1, 384], strides = [1, 1]} : vector<1x512xf32> to vector<1x384xf32>
    %cst_67 = arith.constant 0.000000e+00 : f32
    %197 = vector.broadcast %cst_67 : f32 to vector<1x384xf32>
    %198 = arith.subf %197, %196 : vector<1x384xf32>
    %199 = math.exp %198 : vector<1x384xf32>
    %cst_68 = arith.constant 1.000000e+00 : f32
    %200 = vector.broadcast %cst_68 : f32 to vector<1x384xf32>
    %201 = arith.addf %200, %199 : vector<1x384xf32>
    %202 = tpu.reciprocal %201 {approx = true} : vector<1x384xf32> -> vector<1x384xf32>
    %203 = vector.extract_strided_slice %202 {offsets = [0, 0], sizes = [1, 128], strides = [1, 1]} : vector<1x384xf32> to vector<1x128xf32>
    %204 = vector.extract_strided_slice %202 {offsets = [0, 128], sizes = [1, 128], strides = [1, 1]} : vector<1x384xf32> to vector<1x128xf32>
    %205 = vector.extract_strided_slice %202 {offsets = [0, 256], sizes = [1, 128], strides = [1, 1]} : vector<1x384xf32> to vector<1x128xf32>
    %206 = vector.extract_strided_slice %195 {offsets = [0, 384], sizes = [1, 128], strides = [1, 1]} : vector<1x512xf32> to vector<1x128xf32>
    %207 = math.tanh %206 : vector<1x128xf32>
    %208 = arith.mulf %204, %183 : vector<1x128xf32>
    %209 = arith.mulf %203, %207 : vector<1x128xf32>
    %210 = arith.addf %208, %209 : vector<1x128xf32>
    %211 = math.tanh %210 : vector<1x128xf32>
    %212 = arith.mulf %205, %211 : vector<1x128xf32>
    %c0_69 = arith.constant 0 : index
    %c0_70 = arith.constant 0 : index
    %213 = vector.load %arg4[%c0_69, %c0_70] : memref<1x128xf32, #tpu.memory_space<vmem>>, vector<1x128xf32>
    %214 = arith.mulf %212, %213 : vector<1x128xf32>
    %cst_71 = arith.constant dense<0.000000e+00> : vector<1xf32>
    %215 = vector.multi_reduction <add>, %214, %cst_71 [1] : vector<1x128xf32> to vector<1xf32>
    %216 = vector.shape_cast %215 : vector<1xf32> to vector<1x1xf32>
    %c0_72 = arith.constant 0 : index
    %c0_73 = arith.constant 0 : index
    %217 = vector.load %arg5[%c0_72, %c0_73] : memref<1x1xf32, #tpu.memory_space<vmem>>, vector<1x1xf32>
    %218 = arith.addf %216, %217 : vector<1x1xf32>
    %c0_74 = arith.constant 0 : index
    %c0_75 = arith.constant 0 : index
    %219 = vector.load %arg6[%c0_74, %c0_75] : memref<1x1xf32, #tpu.memory_space<vmem>>, vector<1x1xf32>
    tpu.vector_store %arg6[%c0_74, %c0_75], %218 {strides = array<i32>} : memref<1x1xf32, #tpu.memory_space<vmem>>, vector<1x1xf32>,
    return
  }
}

</mosaic_0001>

<llo_original>
// kernel: tpu_custom_call.1
$region0: #{tpu_custom_call.1}
  #allocation0 [shape = 'u32[]', space=smem, size = 0x4, offset = 0x4, fixed_abs, tag = 'smem constant byte address 0x4 - core index']
  #allocation1 [shape = 'u32[144,128]{1,0:T(1,128)}', space=vmem, size = 0x12000, scoped, tag = 'internal scratch']
  #allocation2 [shape = 'f32[1,1]{1,0:T(1,128)S(1)}', space=vmem, size = 0x200, scoped, tag = 'scoped memory for tpu_custom_call.1']
  %s0 = inlined_call_operand.vmem [shape: f32[8], index: 0, kind: input, shape index: {}]
  %s1 = inlined_call_operand.vmem [shape: f32[1,512], index: 1, kind: input, shape index: {}]
  %s2 = inlined_call_operand.hbm [shape: bf16[128,512], index: 2, kind: input, shape index: {}]
  %s3 = inlined_call_operand.vmem [shape: f32[1,512], index: 3, kind: input, shape index: {}]
  %s4 = inlined_call_operand.vmem [shape: f32[1,128], index: 4, kind: input, shape index: {}]
  %s5 = inlined_call_operand.<no memory space> [shape: f32[1,1], index: 5, kind: input, shape index: {}]
  %s6 = inlined_call_operand.hbm [shape: f32[1,1], index: 6, kind: output, shape index: {}]
  %s7 = sld [smem:[#allocation0]]
  $region42: #{tpu_custom_call.1} parent=0
    _
  %s9 = ssub.s32 1, %s7
  %s10 = scalar_select 0, %s9, %s7
  %v11 = vstv %s5
  %12 = vst [vmem:[#allocation2] sm:$0x1] %v11
  $region1: #{tpu_custom_call.1} parent=0
    #allocation3 [shape = 'u8[512]{0}', space=smem, size = 0x200, scoped, tag = 'input window, operand 0, single buffered']
    #allocation4 [shape = 's32[1]{0}', space=sflag, size = 0x4, scoped, tag = 'scoped memory for tpu_custom_call.1']
    #allocation5 [shape = 's32[1]{0}', space=sflag, size = 0x4, scoped, tag = 'scoped memory for tpu_custom_call.1']
    #allocation6 [shape = 's32[1]{0}', space=sflag, size = 0x4, scoped, tag = 'scoped memory for tpu_custom_call.1']
    #allocation7 [shape = 'u8[131072]{0}', space=vmem, size = 0x20000, scoped, tag = 'input window, operand 2, single buffered']
    #allocation8 [shape = 'u8[512]{0}', space=vmem, size = 0x400, scoped, tag = 'output window, operand 0, single buffered']
    %13 = vsyncpa [#allocation6], 0
    %14 = vsyncpa [#allocation4], 0
    %15 = vsyncpa [#allocation5], 0
    // Predicated region
    $region2: #{tpu_custom_call.1} parent=1 // pred_check
      _
    $region3: #{tpu_custom_call.1} parent=1 // pred_check_branch
      %17 = sbr.rel (0) target = $region5
    $region4: #{tpu_custom_call.1} parent=1 // pred_region
      %s19 = ssub.s32 16, 16
      %20 = vsyncadd [#allocation6], %s19
      %s22 = sshll.u32 %s0, 4
      %s23 = int_to_ptr.vmem [resolvable:$true] %s22
      %25 = dma.vmem_to_smem %s23, 16, [#allocation3], [#allocation6]
    $region5: #{tpu_custom_call.1} parent=1 // pred_fallthru
      _
    // Predicated region
    $region6: #{tpu_custom_call.1} parent=1 // pred_check
      _
    $region7: #{tpu_custom_call.1} parent=1 // pred_check_branch
      %27 = sbr.rel (0) target = $region9
    $region8: #{tpu_custom_call.1} parent=1 // pred_region
      _
    $region9: #{tpu_custom_call.1} parent=1 // pred_fallthru
      _
    // Predicated region
    $region10: #{tpu_custom_call.1} parent=1 // pred_check
      _
    $region11: #{tpu_custom_call.1} parent=1 // pred_check_branch
      %29 = sbr.rel (0) target = $region13
    $region12: #{tpu_custom_call.1} parent=1 // pred_region
      %s31 = ssub.s32 4096, 4096
      %32 = vsyncadd [#allocation4], %s31
      %s33 = sshll.u32 [#allocation7], 4
      %s34 = int_to_ptr.vmem [resolvable:$true] %s33
      %39 = dma.hbm_to_vmem [thread:$0]  %s2, 4096, %s34, [#allocation4], 256, 256, 16
    $region13: #{tpu_custom_call.1} parent=1 // pred_fallthru
      _
    // Predicated region
    $region14: #{tpu_custom_call.1} parent=1 // pred_check
      _
    $region15: #{tpu_custom_call.1} parent=1 // pred_check_branch
      %41 = sbr.rel (0) target = $region17
    $region16: #{tpu_custom_call.1} parent=1 // pred_region
      _
    $region17: #{tpu_custom_call.1} parent=1 // pred_fallthru
      _
    // Predicated region
    $region18: #{tpu_custom_call.1} parent=1 // pred_check
      _
    $region19: #{tpu_custom_call.1} parent=1 // pred_check_branch
      %43 = sbr.rel (0) target = $region21
    $region20: #{tpu_custom_call.1} parent=1 // pred_region
      _
    $region21: #{tpu_custom_call.1} parent=1 // pred_fallthru
      _
    // Predicated region
    $region22: #{tpu_custom_call.1} parent=1 // pred_check
      _
    $region23: #{tpu_custom_call.1} parent=1 // pred_check_branch
      %45 = sbr.rel (0) target = $region25
    $region24: #{tpu_custom_call.1} parent=1 // pred_region
      _
    $region25: #{tpu_custom_call.1} parent=1 // pred_fallthru
      _
    // Predicated region
    $region26: #{tpu_custom_call.1} parent=1 // pred_check
      _
    $region27: #{tpu_custom_call.1} parent=1 // pred_check_branch
      %47 = sbr.rel (0) target = $region29
    $region28: #{tpu_custom_call.1} parent=1 // pred_region
      %48 = dma.done [#allocation6], 16
    $region29: #{tpu_custom_call.1} parent=1 // pred_fallthru
      _
    // Predicated region
    $region30: #{tpu_custom_call.1} parent=1 // pred_check
      _
    $region31: #{tpu_custom_call.1} parent=1 // pred_check_branch
      %50 = sbr.rel (0) target = $region33
    $region32: #{tpu_custom_call.1} parent=1 // pred_region
      %51 = dma.done [#allocation4], 4096
    $region33: #{tpu_custom_call.1} parent=1 // pred_fallthru
      _
    %52 = sfence
    %s54 = sld [smem:[#allocation3]]
    %v55 = vld [vmem:[%s1] sm:$0xf]
    %v56 = vstv %s54
    %v57 = vmul.f32 %v56, %v55
    %v58 = vld [vmem:[%s3] sm:$0xf]
    %v59 = vadd.f32 %v57, %v58
    %v60 = vsub.f32 0.0, %v59
    %v61 = vmul.f32 %v60, 1.442695
    %v62 = vpow.pop %v61
    %v63 = vadd.f32 %v62, 1.0
    %v64 = vrcp.pop %v63
    %v66 = vrot.slane %v59, 3
    %v68 = vtanh.pop %v66
    %v70 = vrot.slane %v64, 1
    %v72 = vmul.f32 %v70, 0.0
    %v73 = vmul.f32 %v64, %v68
    %v74 = vadd.f32 %v72, %v73
    %v75 = vtanh.pop %v74
    %v76 = vrot.slane %v64, 2
    %v78 = vmul.f32 %v76, %v75
    %s79 = sld [smem:[#allocation3 + $0x1]]
    %v80 = vstv %s79
    %v81 = vmul.f32 %v80, %v55
    %v82 = vadd.f32 %v81, %v58
    %v83 = vpack.c.bf16 %v78, %v78
    %v84 = vld [vmem:[#allocation7] sm:$0xff]
    %v85 = vld [vmem:[#allocation7 + $0x8] sm:$0xff]
    %v86 = vld [vmem:[#allocation7 + $0x10] sm:$0xff]
    %v87 = vld [vmem:[#allocation7 + $0x18] sm:$0xff]
    %v88 = vld [vmem:[#allocation7 + $0x20] sm:$0xff]
    %v89 = vld [vmem:[#allocation7 + $0x28] sm:$0xff]
    %v90 = vld [vmem:[#allocation7 + $0x30] sm:$0xff]
    %v91 = vld [vmem:[#allocation7 + $0x38] sm:$0xff]
    %v92 = vld [vmem:[#allocation7 + $0x40] sm:$0xff]
    %v93 = vld [vmem:[#allocation7 + $0x48] sm:$0xff]
    %v94 = vld [vmem:[#allocation7 + $0x50] sm:$0xff]
    %v95 = vld [vmem:[#allocation7 + $0x58] sm:$0xff]
    %v96 = vld [vmem:[#allocation7 + $0x60] sm:$0xff]
    %v97 = vld [vmem:[#allocation7 + $0x68] sm:$0xff]
    %v98 = vld [vmem:[#allocation7 + $0x70] sm:$0xff]
    %v99 = vld [vmem:[#allocation7 + $0x78] sm:$0xff]
    %v100 = vld [vmem:[#allocation7 + $0x80] sm:$0xff]
    %v101 = vld [vmem:[#allocation7 + $0x88] sm:$0xff]
    %v102 = vld [vmem:[#allocation7 + $0x90] sm:$0xff]
    %v103 = vld [vmem:[#allocation7 + $0x98] sm:$0xff]
    %v104 = vld [vmem:[#allocation7 + $0xa0] sm:$0xff]
    %v105 = vld [vmem:[#allocation7 + $0xa8] sm:$0xff]
    %v106 = vld [vmem:[#allocation7 + $0xb0] sm:$0xff]
    %v107 = vld [vmem:[#allocation7 + $0xb8] sm:$0xff]
    %v108 = vld [vmem:[#allocation7 + $0xc0] sm:$0xff]
    %v109 = vld [vmem:[#allocation7 + $0xc8] sm:$0xff]
    %v110 = vld [vmem:[#allocation7 + $0xd0] sm:$0xff]
    %v111 = vld [vmem:[#allocation7 + $0xd8] sm:$0xff]
    %v112 = vld [vmem:[#allocation7 + $0xe0] sm:$0xff]
    %v113 = vld [vmem:[#allocation7 + $0xe8] sm:$0xff]
    %v114 = vld [vmem:[#allocation7 + $0xf0] sm:$0xff]
    %v115 = vld [vmem:[#allocation7 + $0xf8] sm:$0xff]
    %v148 = vunpack.c.l.b16 %v84
    %v149 = vunpack.c.h.b16 %v84
    %v150 = vunpack.c.l.b16 %v85
    %v151 = vunpack.c.h.b16 %v85
    %v152 = vunpack.c.l.b16 %v86
    %v153 = vunpack.c.h.b16 %v86
    %v154 = vunpack.c.l.b16 %v87
    %v155 = vunpack.c.h.b16 %v87
    %v156 = vunpack.c.l.b16 %v88
    %v157 = vunpack.c.h.b16 %v88
    %v158 = vunpack.c.l.b16 %v89
    %v159 = vunpack.c.h.b16 %v89
    %v160 = vunpack.c.l.b16 %v90
    %v161 = vunpack.c.h.b16 %v90
    %v162 = vunpack.c.l.b16 %v91
    %v163 = vunpack.c.h.b16 %v91
    %v164 = vunpack.c.l.b16 %v92
    %v165 = vunpack.c.h.b16 %v92
    %v166 = vunpack.c.l.b16 %v93
    %v167 = vunpack.c.h.b16 %v93
    %v168 = vunpack.c.l.b16 %v94
    %v169 = vunpack.c.h.b16 %v94
    %v170 = vunpack.c.l.b16 %v95
    %v171 = vunpack.c.h.b16 %v95
    %v172 = vunpack.c.l.b16 %v96
    %v173 = vunpack.c.h.b16 %v96
    %v174 = vunpack.c.l.b16 %v97
    %v175 = vunpack.c.h.b16 %v97
    %v176 = vunpack.c.l.b16 %v98
    %v177 = vunpack.c.h.b16 %v98
    %v178 = vunpack.c.l.b16 %v99
    %v179 = vunpack.c.h.b16 %v99
    %v180 = vunpack.c.l.b16 %v100
    %v181 = vunpack.c.h.b16 %v100
    %v182 = vunpack.c.l.b16 %v101
    %v183 = vunpack.c.h.b16 %v101
    %v184 = vunpack.c.l.b16 %v102
    %v185 = vunpack.c.h.b16 %v102
    %v186 = vunpack.c.l.b16 %v103
    %v187 = vunpack.c.h.b16 %v103
    %v188 = vunpack.c.l.b16 %v104
    %v189 = vunpack.c.h.b16 %v104
    %v190 = vunpack.c.l.b16 %v105
    %v191 = vunpack.c.h.b16 %v105
    %v192 = vunpack.c.l.b16 %v106
    %v193 = vunpack.c.h.b16 %v106
    %v194 = vunpack.c.l.b16 %v107
    %v195 = vunpack.c.h.b16 %v107
    %v196 = vunpack.c.l.b16 %v108
    %v197 = vunpack.c.h.b16 %v108
    %v198 = vunpack.c.l.b16 %v109
    %v199 = vunpack.c.h.b16 %v109
    %v200 = vunpack.c.l.b16 %v110
    %v201 = vunpack.c.h.b16 %v110
    %v202 = vunpack.c.l.b16 %v111
    %v203 = vunpack.c.h.b16 %v111
    %v204 = vunpack.c.l.b16 %v112
    %v205 = vunpack.c.h.b16 %v112
    %v206 = vunpack.c.l.b16 %v113
    %v207 = vunpack.c.h.b16 %v113
    %v208 = vunpack.c.l.b16 %v114
    %v209 = vunpack.c.h.b16 %v114
    %v210 = vunpack.c.l.b16 %v115
    %v211 = vunpack.c.h.b16 %v115
    %v212 = vpack.c.b16 %v152, %v148
    %v213 = vpack.c.b16 %v153, %v149
    %v214 = vpack.c.b16 %v154, %v150
    %v215 = vpack.c.b16 %v155, %v151
    %v216 = vpack.c.b16 %v160, %v156
    %v217 = vpack.c.b16 %v161, %v157
    %v218 = vpack.c.b16 %v162, %v158
    %v219 = vpack.c.b16 %v163, %v159
    %v220 = vpack.c.b16 %v168, %v164
    %v221 = vpack.c.b16 %v169, %v165
    %v222 = vpack.c.b16 %v170, %v166
    %v223 = vpack.c.b16 %v171, %v167
    %v224 = vpack.c.b16 %v176, %v172
    %v225 = vpack.c.b16 %v177, %v173
    %v226 = vpack.c.b16 %v178, %v174
    %v227 = vpack.c.b16 %v179, %v175
    %v228 = vpack.c.b16 %v184, %v180
    %v229 = vpack.c.b16 %v185, %v181
    %v230 = vpack.c.b16 %v186, %v182
    %v231 = vpack.c.b16 %v187, %v183
    %v232 = vpack.c.b16 %v192, %v188
    %v233 = vpack.c.b16 %v193, %v189
    %v234 = vpack.c.b16 %v194, %v190
    %v235 = vpack.c.b16 %v195, %v191
    %v236 = vpack.c.b16 %v200, %v196
    %v237 = vpack.c.b16 %v201, %v197
    %v238 = vpack.c.b16 %v202, %v198
    %v239 = vpack.c.b16 %v203, %v199
    %v240 = vpack.c.b16 %v208, %v204
    %v241 = vpack.c.b16 %v209, %v205
    %v242 = vpack.c.b16 %v210, %v206
    %v243 = vpack.c.b16 %v211, %v207
    %276 = vmatprep.subr.bf16.mxu0 %v213
    %277 = vmatpush1.bf16.msra.mxu0 %v212
    %278 = vmatprep.subr.bf16.mxu0 %v217
    %279 = vmatpush1.bf16.msra.mxu0 %v216
    %280 = vmatprep.subr.bf16.mxu0 %v221
    %281 = vmatpush1.bf16.msra.mxu0 %v220
    %282 = vmatprep.subr.bf16.mxu0 %v225
    %283 = vmatpush1.bf16.msra.mxu0 %v224
    %284 = vmatprep.subr.bf16.mxu0 %v229
    %285 = vmatpush1.bf16.msra.mxu0 %v228
    %286 = vmatprep.subr.bf16.mxu0 %v233
    %287 = vmatpush1.bf16.msra.mxu0 %v232
    %288 = vmatprep.subr.bf16.mxu0 %v237
    %289 = vmatpush1.bf16.msra.mxu0 %v236
    %290 = vmatprep.subr.bf16.mxu0 %v241
    %291 = vmatpush1.bf16.msra.mxu0 %v240
    %292 = vmatprep.subr.bf16.mxu0 0
    %293 = vmatpush1.bf16.msra.mxu0 0
    %294 = vmatprep.subr.bf16.mxu0 0
    %295 = vmatpush1.bf16.msra.mxu0 0
    %296 = vmatprep.subr.bf16.mxu0 0
    %297 = vmatpush1.bf16.msra.mxu0 0
    %298 = vmatprep.subr.bf16.mxu0 0
    %299 = vmatpush1.bf16.msra.mxu0 0
    %300 = vmatprep.subr.bf16.mxu0 0
    %301 = vmatpush1.bf16.msra.mxu0 0
    %302 = vmatprep.subr.bf16.mxu0 0
    %303 = vmatpush1.bf16.msra.mxu0 0
    %304 = vmatprep.subr.bf16.mxu0 0
    %305 = vmatpush1.bf16.msra.mxu0 0
    %306 = vmatprep.subr.bf16.mxu0 0
    %307 = vmatpush1.bf16.msra.mxu0 0
    %308 = vmatprep.mubr.bf16.mxu0 0
    %309 = vmatmul.mubr.bf16.gmra.mrb[0].mxu0 %v83
    %v310 = vpop.f32.mrb[0].mxu0
    %v311 = vadd.f32 0.0, %v310
    %v312 = vpop.f32.mrb[0].mxu0
    %v313 = vadd.f32 0.0, %v312
    %v314 = vpop.f32.mrb[0].mxu0
    %v315 = vpop.f32.mrb[0].mxu0
    %316 = vdwg.mxu0
    %317 = vmatprep.subr.bf16.mxu0 %v215
    %318 = vmatpush1.bf16.msra.mxu0 %v214
    %319 = vmatprep.subr.bf16.mxu0 %v219
    %320 = vmatpush1.bf16.msra.mxu0 %v218
    %321 = vmatprep.subr.bf16.mxu0 %v223
    %322 = vmatpush1.bf16.msra.mxu0 %v222
    %323 = vmatprep.subr.bf16.mxu0 %v227
    %324 = vmatpush1.bf16.msra.mxu0 %v226
    %325 = vmatprep.subr.bf16.mxu0 %v231
    %326 = vmatpush1.bf16.msra.mxu0 %v230
    %327 = vmatprep.subr.bf16.mxu0 %v235
    %328 = vmatpush1.bf16.msra.mxu0 %v234
    %329 = vmatprep.subr.bf16.mxu0 %v239
    %330 = vmatpush1.bf16.msra.mxu0 %v238
    %331 = vmatprep.subr.bf16.mxu0 %v243
    %332 = vmatpush1.bf16.msra.mxu0 %v242
    %333 = vmatprep.subr.bf16.mxu0 0
    %334 = vmatpush1.bf16.msra.mxu0 0
    %335 = vmatprep.subr.bf16.mxu0 0
    %336 = vmatpush1.bf16.msra.mxu0 0
    %337 = vmatprep.subr.bf16.mxu0 0
    %338 = vmatpush1.bf16.msra.mxu0 0
    %339 = vmatprep.subr.bf16.mxu0 0
    %340 = vmatpush1.bf16.msra.mxu0 0
    %341 = vmatprep.subr.bf16.mxu0 0
    %342 = vmatpush1.bf16.msra.mxu0 0
    %343 = vmatprep.subr.bf16.mxu0 0
    %344 = vmatpush1.bf16.msra.mxu0 0
    %345 = vmatprep.subr.bf16.mxu0 0
    %346 = vmatpush1.bf16.msra.mxu0 0
    %347 = vmatprep.subr.bf16.mxu0 0
    %348 = vmatpush1.bf16.msra.mxu0 0
    %349 = vmatprep.mubr.bf16.mxu0 0
    %350 = vmatmul.mubr.bf16.gmra.mrb[0].mxu0 %v83
    %v351 = vpop.f32.mrb[0].mxu0
    %v352 = vadd.f32 0.0, %v351
    %v353 = vpop.f32.mrb[0].mxu0
    %v354 = vadd.f32 0.0, %v353
    %v355 = vpop.f32.mrb[0].mxu0
    %v356 = vpop.f32.mrb[0].mxu0
    %357 = vdwg.mxu0
    %v362 = vcombine.low %v311, %v313
    %v363 = vcombine.low %v352, %v354
    %v365 = vunpack.c.l.s4 1966171168
    %v366 = vunpack.c.0.s8 %v365
    %v367 = vlaneseq
    %v368 = vshrl.u32 %v367, 7
    %v369 = vsub.s32 %v366, %v368
    %v370 = vrot.slane %v362, %v369
    %v372 = vunpack.c.l.s4 1966171168
    %v373 = vunpack.c.0.s8 %v372
    %v374 = vlaneseq
    %v375 = vshrl.u32 %v374, 7
    %v376 = vsub.s32 %v373, %v375
    %v377 = vrot.slane %v363, %v376
    %v378 = vcombine.low %v370, %v377
    %v380 = vunpack.c.l.s4 1966171168
    %v381 = vunpack.c.0.s8 %v380
    %v382 = vlaneseq
    %v383 = vshrl.u32 %v382, 7
    %v384 = vsub.s32 %v381, %v383
    %v385 = vrot.slane %v378, %v384
    %v387 = vadd.f32 %v82, %v385
    %v388 = vsub.f32 0.0, %v387
    %v389 = vmul.f32 %v388, 1.442695
    %v390 = vpow.pop %v389
    %v391 = vadd.f32 %v390, 1.0
    %v392 = vrcp.pop %v391
    %v394 = vrot.slane %v387, 3
    %v396 = vtanh.pop %v394
    %v398 = vrot.slane %v392, 1
    %v400 = vmul.f32 %v398, %v74
    %v401 = vmul.f32 %v392, %v396
    %v402 = vadd.f32 %v400, %v401
    %v403 = vtanh.pop %v402
    %v404 = vrot.slane %v392, 2
    %v406 = vmul.f32 %v404, %v403
    %s407 = sld [smem:[#allocation3 + $0x2]]
    %v408 = vstv %s407
    %v409 = vmul.f32 %v408, %v55
    %v410 = vadd.f32 %v409, %v58
    %v411 = vpack.c.bf16 %v406, %v406
    %412 = vmatprep.subr.bf16.mxu0 %v213
    %413 = vmatpush1.bf16.msra.mxu0 %v212
    %414 = vmatprep.subr.bf16.mxu0 %v217
    %415 = vmatpush1.bf16.msra.mxu0 %v216
    %416 = vmatprep.subr.bf16.mxu0 %v221
    %417 = vmatpush1.bf16.msra.mxu0 %v220
    %418 = vmatprep.subr.bf16.mxu0 %v225
    %419 = vmatpush1.bf16.msra.mxu0 %v224
    %420 = vmatprep.subr.bf16.mxu0 %v229
    %421 = vmatpush1.bf16.msra.mxu0 %v228
    %422 = vmatprep.subr.bf16.mxu0 %v233
    %423 = vmatpush1.bf16.msra.mxu0 %v232
    %424 = vmatprep.subr.bf16.mxu0 %v237
    %425 = vmatpush1.bf16.msra.mxu0 %v236
    %426 = vmatprep.subr.bf16.mxu0 %v241
    %427 = vmatpush1.bf16.msra.mxu0 %v240
    %428 = vmatprep.subr.bf16.mxu0 0
    %429 = vmatpush1.bf16.msra.mxu0 0
    %430 = vmatprep.subr.bf16.mxu0 0
    %431 = vmatpush1.bf16.msra.mxu0 0
    %432 = vmatprep.subr.bf16.mxu0 0
    %433 = vmatpush1.bf16.msra.mxu0 0
    %434 = vmatprep.subr.bf16.mxu0 0
    %435 = vmatpush1.bf16.msra.mxu0 0
    %436 = vmatprep.subr.bf16.mxu0 0
    %437 = vmatpush1.bf16.msra.mxu0 0
    %438 = vmatprep.subr.bf16.mxu0 0
    %439 = vmatpush1.bf16.msra.mxu0 0
    %440 = vmatprep.subr.bf16.mxu0 0
    %441 = vmatpush1.bf16.msra.mxu0 0
    %442 = vmatprep.subr.bf16.mxu0 0
    %443 = vmatpush1.bf16.msra.mxu0 0
    %444 = vmatprep.mubr.bf16.mxu0 0
    %445 = vmatmul.mubr.bf16.gmra.mrb[0].mxu0 %v411
    %v446 = vpop.f32.mrb[0].mxu0
    %v447 = vadd.f32 0.0, %v446
    %v448 = vpop.f32.mrb[0].mxu0
    %v449 = vadd.f32 0.0, %v448
    %v450 = vpop.f32.mrb[0].mxu0
    %v451 = vpop.f32.mrb[0].mxu0
    %452 = vdwg.mxu0
    %453 = vmatprep.subr.bf16.mxu0 %v215
    %454 = vmatpush1.bf16.msra.mxu0 %v214
    %455 = vmatprep.subr.bf16.mxu0 %v219
    %456 = vmatpush1.bf16.msra.mxu0 %v218
    %457 = vmatprep.subr.bf16.mxu0 %v223
    %458 = vmatpush1.bf16.msra.mxu0 %v222
    %459 = vmatprep.subr.bf16.mxu0 %v227
    %460 = vmatpush1.bf16.msra.mxu0 %v226
    %461 = vmatprep.subr.bf16.mxu0 %v231
    %462 = vmatpush1.bf16.msra.mxu0 %v230
    %463 = vmatprep.subr.bf16.mxu0 %v235
    %464 = vmatpush1.bf16.msra.mxu0 %v234
    %465 = vmatprep.subr.bf16.mxu0 %v239
    %466 = vmatpush1.bf16.msra.mxu0 %v238
    %467 = vmatprep.subr.bf16.mxu0 %v243
    %468 = vmatpush1.bf16.msra.mxu0 %v242
    %469 = vmatprep.subr.bf16.mxu0 0
    %470 = vmatpush1.bf16.msra.mxu0 0
    %471 = vmatprep.subr.bf16.mxu0 0
    %472 = vmatpush1.bf16.msra.mxu0 0
    %473 = vmatprep.subr.bf16.mxu0 0
    %474 = vmatpush1.bf16.msra.mxu0 0
    %475 = vmatprep.subr.bf16.mxu0 0
    %476 = vmatpush1.bf16.msra.mxu0 0
    %477 = vmatprep.subr.bf16.mxu0 0
    %478 = vmatpush1.bf16.msra.mxu0 0
    %479 = vmatprep.subr.bf16.mxu0 0
    %480 = vmatpush1.bf16.msra.mxu0 0
    %481 = vmatprep.subr.bf16.mxu0 0
    %482 = vmatpush1.bf16.msra.mxu0 0
    %483 = vmatprep.subr.bf16.mxu0 0
    %484 = vmatpush1.bf16.msra.mxu0 0
    %485 = vmatprep.mubr.bf16.mxu0 0
    %486 = vmatmul.mubr.bf16.gmra.mrb[0].mxu0 %v411
    %v487 = vpop.f32.mrb[0].mxu0
    %v488 = vadd.f32 0.0, %v487
    %v489 = vpop.f32.mrb[0].mxu0
    %v490 = vadd.f32 0.0, %v489
    %v491 = vpop.f32.mrb[0].mxu0
    %v492 = vpop.f32.mrb[0].mxu0
    %493 = vdwg.mxu0
    %v498 = vcombine.low %v447, %v449
    %v499 = vcombine.low %v488, %v490
    %v501 = vunpack.c.l.s4 1966171168
    %v502 = vunpack.c.0.s8 %v501
    %v503 = vlaneseq
    %v504 = vshrl.u32 %v503, 7
    %v505 = vsub.s32 %v502, %v504
    %v506 = vrot.slane %v498, %v505
    %v508 = vunpack.c.l.s4 1966171168
    %v509 = vunpack.c.0.s8 %v508
    %v510 = vlaneseq
    %v511 = vshrl.u32 %v510, 7
    %v512 = vsub.s32 %v509, %v511
    %v513 = vrot.slane %v499, %v512
    %v514 = vcombine.low %v506, %v513
    %v516 = vunpack.c.l.s4 1966171168
    %v517 = vunpack.c.0.s8 %v516
    %v518 = vlaneseq
    %v519 = vshrl.u32 %v518, 7
    %v520 = vsub.s32 %v517, %v519
    %v521 = vrot.slane %v514, %v520
    %v523 = vadd.f32 %v410, %v521
    %v524 = vsub.f32 0.0, %v523
    %v525 = vmul.f32 %v524, 1.442695
    %v526 = vpow.pop %v525
    %v527 = vadd.f32 %v526, 1.0
    %v528 = vrcp.pop %v527
    %v530 = vrot.slane %v523, 3
    %v532 = vtanh.pop %v530
    %v534 = vrot.slane %v528, 1
    %v536 = vmul.f32 %v534, %v402
    %v537 = vmul.f32 %v528, %v532
    %v538 = vadd.f32 %v536, %v537
    %v539 = vtanh.pop %v538
    %v540 = vrot.slane %v528, 2
    %v542 = vmul.f32 %v540, %v539
    %s543 = sld [smem:[#allocation3 + $0x3]]
    %v544 = vstv %s543
    %v545 = vmul.f32 %v544, %v55
    %v546 = vadd.f32 %v545, %v58
    %v547 = vpack.c.bf16 %v542, %v542
    %548 = vmatprep.subr.bf16.mxu0 %v213
    %549 = vmatpush1.bf16.msra.mxu0 %v212
    %550 = vmatprep.subr.bf16.mxu0 %v217
    %551 = vmatpush1.bf16.msra.mxu0 %v216
    %552 = vmatprep.subr.bf16.mxu0 %v221
    %553 = vmatpush1.bf16.msra.mxu0 %v220
    %554 = vmatprep.subr.bf16.mxu0 %v225
    %555 = vmatpush1.bf16.msra.mxu0 %v224
    %556 = vmatprep.subr.bf16.mxu0 %v229
    %557 = vmatpush1.bf16.msra.mxu0 %v228
    %558 = vmatprep.subr.bf16.mxu0 %v233
    %559 = vmatpush1.bf16.msra.mxu0 %v232
    %560 = vmatprep.subr.bf16.mxu0 %v237
    %561 = vmatpush1.bf16.msra.mxu0 %v236
    %562 = vmatprep.subr.bf16.mxu0 %v241
    %563 = vmatpush1.bf16.msra.mxu0 %v240
    %564 = vmatprep.subr.bf16.mxu0 0
    %565 = vmatpush1.bf16.msra.mxu0 0
    %566 = vmatprep.subr.bf16.mxu0 0
    %567 = vmatpush1.bf16.msra.mxu0 0
    %568 = vmatprep.subr.bf16.mxu0 0
    %569 = vmatpush1.bf16.msra.mxu0 0
    %570 = vmatprep.subr.bf16.mxu0 0
    %571 = vmatpush1.bf16.msra.mxu0 0
    %572 = vmatprep.subr.bf16.mxu0 0
    %573 = vmatpush1.bf16.msra.mxu0 0
    %574 = vmatprep.subr.bf16.mxu0 0
    %575 = vmatpush1.bf16.msra.mxu0 0
    %576 = vmatprep.subr.bf16.mxu0 0
    %577 = vmatpush1.bf16.msra.mxu0 0
    %578 = vmatprep.subr.bf16.mxu0 0
    %579 = vmatpush1.bf16.msra.mxu0 0
    %580 = vmatprep.mubr.bf16.mxu0 0
    %581 = vmatmul.mubr.bf16.gmra.mrb[0].mxu0 %v547
    %v582 = vpop.f32.mrb[0].mxu0
    %v583 = vadd.f32 0.0, %v582
    %v584 = vpop.f32.mrb[0].mxu0
    %v585 = vadd.f32 0.0, %v584
    %v586 = vpop.f32.mrb[0].mxu0
    %v587 = vpop.f32.mrb[0].mxu0
    %588 = vdwg.mxu0
    %589 = vmatprep.subr.bf16.mxu0 %v215
    %590 = vmatpush1.bf16.msra.mxu0 %v214
    %591 = vmatprep.subr.bf16.mxu0 %v219
    %592 = vmatpush1.bf16.msra.mxu0 %v218
    %593 = vmatprep.subr.bf16.mxu0 %v223
    %594 = vmatpush1.bf16.msra.mxu0 %v222
    %595 = vmatprep.subr.bf16.mxu0 %v227
    %596 = vmatpush1.bf16.msra.mxu0 %v226
    %597 = vmatprep.subr.bf16.mxu0 %v231
    %598 = vmatpush1.bf16.msra.mxu0 %v230
    %599 = vmatprep.subr.bf16.mxu0 %v235
    %600 = vmatpush1.bf16.msra.mxu0 %v234
    %601 = vmatprep.subr.bf16.mxu0 %v239
    %602 = vmatpush1.bf16.msra.mxu0 %v238
    %603 = vmatprep.subr.bf16.mxu0 %v243
    %604 = vmatpush1.bf16.msra.mxu0 %v242
    %605 = vmatprep.subr.bf16.mxu0 0
    %606 = vmatpush1.bf16.msra.mxu0 0
    %607 = vmatprep.subr.bf16.mxu0 0
    %608 = vmatpush1.bf16.msra.mxu0 0
    %609 = vmatprep.subr.bf16.mxu0 0
    %610 = vmatpush1.bf16.msra.mxu0 0
    %611 = vmatprep.subr.bf16.mxu0 0
    %612 = vmatpush1.bf16.msra.mxu0 0
    %613 = vmatprep.subr.bf16.mxu0 0
    %614 = vmatpush1.bf16.msra.mxu0 0
    %615 = vmatprep.subr.bf16.mxu0 0
    %616 = vmatpush1.bf16.msra.mxu0 0
    %617 = vmatprep.subr.bf16.mxu0 0
    %618 = vmatpush1.bf16.msra.mxu0 0
    %619 = vmatprep.subr.bf16.mxu0 0
    %620 = vmatpush1.bf16.msra.mxu0 0
    %621 = vmatprep.mubr.bf16.mxu0 0
    %622 = vmatmul.mubr.bf16.gmra.mrb[0].mxu0 %v547
    %v623 = vpop.f32.mrb[0].mxu0
    %v624 = vadd.f32 0.0, %v623
    %v625 = vpop.f32.mrb[0].mxu0
    %v626 = vadd.f32 0.0, %v625
    %v627 = vpop.f32.mrb[0].mxu0
    %v628 = vpop.f32.mrb[0].mxu0
    %629 = vdwg.mxu0
    %v634 = vcombine.low %v583, %v585
    %v635 = vcombine.low %v624, %v626
    %v637 = vunpack.c.l.s4 1966171168
    %v638 = vunpack.c.0.s8 %v637
    %v639 = vlaneseq
    %v640 = vshrl.u32 %v639, 7
    %v641 = vsub.s32 %v638, %v640
    %v642 = vrot.slane %v634, %v641
    %v644 = vunpack.c.l.s4 1966171168
    %v645 = vunpack.c.0.s8 %v644
    %v646 = vlaneseq
    %v647 = vshrl.u32 %v646, 7
    %v648 = vsub.s32 %v645, %v647
    %v649 = vrot.slane %v635, %v648
    %v650 = vcombine.low %v642, %v649
    %v652 = vunpack.c.l.s4 1966171168
    %v653 = vunpack.c.0.s8 %v652
    %v654 = vlaneseq
    %v655 = vshrl.u32 %v654, 7
    %v656 = vsub.s32 %v653, %v655
    %v657 = vrot.slane %v650, %v656
    %v659 = vadd.f32 %v546, %v657
    %v660 = vsub.f32 0.0, %v659
    %v661 = vmul.f32 %v660, 1.442695
    %v662 = vpow.pop %v661
    %v663 = vadd.f32 %v662, 1.0
    %v664 = vrcp.pop %v663
    %v666 = vrot.slane %v659, 3
    %v668 = vtanh.pop %v666
    %v670 = vrot.slane %v664, 1
    %v672 = vmul.f32 %v670, %v538
    %v673 = vmul.f32 %v664, %v668
    %v674 = vadd.f32 %v672, %v673
    %v675 = vtanh.pop %v674
    %v676 = vrot.slane %v664, 2
    %v678 = vmul.f32 %v676, %v675
    %s679 = sld [smem:[#allocation3 + $0x4]]
    %v680 = vstv %s679
    %v681 = vmul.f32 %v680, %v55
    %v682 = vadd.f32 %v681, %v58
    %v683 = vpack.c.bf16 %v678, %v678
    %684 = vmatprep.subr.bf16.mxu0 %v213
    %685 = vmatpush1.bf16.msra.mxu0 %v212
    %686 = vmatprep.subr.bf16.mxu0 %v217
    %687 = vmatpush1.bf16.msra.mxu0 %v216
    %688 = vmatprep.subr.bf16.mxu0 %v221
    %689 = vmatpush1.bf16.msra.mxu0 %v220
    %690 = vmatprep.subr.bf16.mxu0 %v225
    %691 = vmatpush1.bf16.msra.mxu0 %v224
    %692 = vmatprep.subr.bf16.mxu0 %v229
    %693 = vmatpush1.bf16.msra.mxu0 %v228
    %694 = vmatprep.subr.bf16.mxu0 %v233
    %695 = vmatpush1.bf16.msra.mxu0 %v232
    %696 = vmatprep.subr.bf16.mxu0 %v237
    %697 = vmatpush1.bf16.msra.mxu0 %v236
    %698 = vmatprep.subr.bf16.mxu0 %v241
    %699 = vmatpush1.bf16.msra.mxu0 %v240
    %700 = vmatprep.subr.bf16.mxu0 0
    %701 = vmatpush1.bf16.msra.mxu0 0
    %702 = vmatprep.subr.bf16.mxu0 0
    %703 = vmatpush1.bf16.msra.mxu0 0
    %704 = vmatprep.subr.bf16.mxu0 0
    %705 = vmatpush1.bf16.msra.mxu0 0
    %706 = vmatprep.subr.bf16.mxu0 0
    %707 = vmatpush1.bf16.msra.mxu0 0
    %708 = vmatprep.subr.bf16.mxu0 0
    %709 = vmatpush1.bf16.msra.mxu0 0
    %710 = vmatprep.subr.bf16.mxu0 0
    %711 = vmatpush1.bf16.msra.mxu0 0
    %712 = vmatprep.subr.bf16.mxu0 0
    %713 = vmatpush1.bf16.msra.mxu0 0
    %714 = vmatprep.subr.bf16.mxu0 0
    %715 = vmatpush1.bf16.msra.mxu0 0
    %716 = vmatprep.mubr.bf16.mxu0 0
    %717 = vmatmul.mubr.bf16.gmra.mrb[0].mxu0 %v683
    %v718 = vpop.f32.mrb[0].mxu0
    %v719 = vadd.f32 0.0, %v718
    %v720 = vpop.f32.mrb[0].mxu0
    %v721 = vadd.f32 0.0, %v720
    %v722 = vpop.f32.mrb[0].mxu0
    %v723 = vpop.f32.mrb[0].mxu0
    %724 = vdwg.mxu0
    %725 = vmatprep.subr.bf16.mxu0 %v215
    %726 = vmatpush1.bf16.msra.mxu0 %v214
    %727 = vmatprep.subr.bf16.mxu0 %v219
    %728 = vmatpush1.bf16.msra.mxu0 %v218
    %729 = vmatprep.subr.bf16.mxu0 %v223
    %730 = vmatpush1.bf16.msra.mxu0 %v222
    %731 = vmatprep.subr.bf16.mxu0 %v227
    %732 = vmatpush1.bf16.msra.mxu0 %v226
    %733 = vmatprep.subr.bf16.mxu0 %v231
    %734 = vmatpush1.bf16.msra.mxu0 %v230
    %735 = vmatprep.subr.bf16.mxu0 %v235
    %736 = vmatpush1.bf16.msra.mxu0 %v234
    %737 = vmatprep.subr.bf16.mxu0 %v239
    %738 = vmatpush1.bf16.msra.mxu0 %v238
    %739 = vmatprep.subr.bf16.mxu0 %v243
    %740 = vmatpush1.bf16.msra.mxu0 %v242
    %741 = vmatprep.subr.bf16.mxu0 0
    %742 = vmatpush1.bf16.msra.mxu0 0
    %743 = vmatprep.subr.bf16.mxu0 0
    %744 = vmatpush1.bf16.msra.mxu0 0
    %745 = vmatprep.subr.bf16.mxu0 0
    %746 = vmatpush1.bf16.msra.mxu0 0
    %747 = vmatprep.subr.bf16.mxu0 0
    %748 = vmatpush1.bf16.msra.mxu0 0
    %749 = vmatprep.subr.bf16.mxu0 0
    %750 = vmatpush1.bf16.msra.mxu0 0
    %751 = vmatprep.subr.bf16.mxu0 0
    %752 = vmatpush1.bf16.msra.mxu0 0
    %753 = vmatprep.subr.bf16.mxu0 0
    %754 = vmatpush1.bf16.msra.mxu0 0
    %755 = vmatprep.subr.bf16.mxu0 0
    %756 = vmatpush1.bf16.msra.mxu0 0
    %757 = vmatprep.mubr.bf16.mxu0 0
    %758 = vmatmul.mubr.bf16.gmra.mrb[0].mxu0 %v683
    %v759 = vpop.f32.mrb[0].mxu0
    %v760 = vadd.f32 0.0, %v759
    %v761 = vpop.f32.mrb[0].mxu0
    %v762 = vadd.f32 0.0, %v761
    %v763 = vpop.f32.mrb[0].mxu0
    %v764 = vpop.f32.mrb[0].mxu0
    %765 = vdwg.mxu0
    %v770 = vcombine.low %v719, %v721
    %v771 = vcombine.low %v760, %v762
    %v773 = vunpack.c.l.s4 1966171168
    %v774 = vunpack.c.0.s8 %v773
    %v775 = vlaneseq
    %v776 = vshrl.u32 %v775, 7
    %v777 = vsub.s32 %v774, %v776
    %v778 = vrot.slane %v770, %v777
    %v780 = vunpack.c.l.s4 1966171168
    %v781 = vunpack.c.0.s8 %v780
    %v782 = vlaneseq
    %v783 = vshrl.u32 %v782, 7
    %v784 = vsub.s32 %v781, %v783
    %v785 = vrot.slane %v771, %v784
    %v786 = vcombine.low %v778, %v785
    %v788 = vunpack.c.l.s4 1966171168
    %v789 = vunpack.c.0.s8 %v788
    %v790 = vlaneseq
    %v791 = vshrl.u32 %v790, 7
    %v792 = vsub.s32 %v789, %v791
    %v793 = vrot.slane %v786, %v792
    %v795 = vadd.f32 %v682, %v793
    %v796 = vsub.f32 0.0, %v795
    %v797 = vmul.f32 %v796, 1.442695
    %v798 = vpow.pop %v797
    %v799 = vadd.f32 %v798, 1.0
    %v800 = vrcp.pop %v799
    %v802 = vrot.slane %v795, 3
    %v804 = vtanh.pop %v802
    %v806 = vrot.slane %v800, 1
    %v808 = vmul.f32 %v806, %v674
    %v809 = vmul.f32 %v800, %v804
    %v810 = vadd.f32 %v808, %v809
    %v811 = vtanh.pop %v810
    %v812 = vrot.slane %v800, 2
    %v814 = vmul.f32 %v812, %v811
    %s815 = sld [smem:[#allocation3 + $0x5]]
    %v816 = vstv %s815
    %v817 = vmul.f32 %v816, %v55
    %v818 = vadd.f32 %v817, %v58
    %v819 = vpack.c.bf16 %v814, %v814
    %820 = vmatprep.subr.bf16.mxu0 %v213
    %821 = vmatpush1.bf16.msra.mxu0 %v212
    %822 = vmatprep.subr.bf16.mxu0 %v217
    %823 = vmatpush1.bf16.msra.mxu0 %v216
    %824 = vmatprep.subr.bf16.mxu0 %v221
    %825 = vmatpush1.bf16.msra.mxu0 %v220
    %826 = vmatprep.subr.bf16.mxu0 %v225
    %827 = vmatpush1.bf16.msra.mxu0 %v224
    %828 = vmatprep.subr.bf16.mxu0 %v229
    %829 = vmatpush1.bf16.msra.mxu0 %v228
    %830 = vmatprep.subr.bf16.mxu0 %v233
    %831 = vmatpush1.bf16.msra.mxu0 %v232
    %832 = vmatprep.subr.bf16.mxu0 %v237
    %833 = vmatpush1.bf16.msra.mxu0 %v236
    %834 = vmatprep.subr.bf16.mxu0 %v241
    %835 = vmatpush1.bf16.msra.mxu0 %v240
    %836 = vmatprep.subr.bf16.mxu0 0
    %837 = vmatpush1.bf16.msra.mxu0 0
    %838 = vmatprep.subr.bf16.mxu0 0
    %839 = vmatpush1.bf16.msra.mxu0 0
    %840 = vmatprep.subr.bf16.mxu0 0
    %841 = vmatpush1.bf16.msra.mxu0 0
    %842 = vmatprep.subr.bf16.mxu0 0
    %843 = vmatpush1.bf16.msra.mxu0 0
    %844 = vmatprep.subr.bf16.mxu0 0
    %845 = vmatpush1.bf16.msra.mxu0 0
    %846 = vmatprep.subr.bf16.mxu0 0
    %847 = vmatpush1.bf16.msra.mxu0 0
    %848 = vmatprep.subr.bf16.mxu0 0
    %849 = vmatpush1.bf16.msra.mxu0 0
    %850 = vmatprep.subr.bf16.mxu0 0
    %851 = vmatpush1.bf16.msra.mxu0 0
    %852 = vmatprep.mubr.bf16.mxu0 0
    %853 = vmatmul.mubr.bf16.gmra.mrb[0].mxu0 %v819
    %v854 = vpop.f32.mrb[0].mxu0
    %v855 = vadd.f32 0.0, %v854
    %v856 = vpop.f32.mrb[0].mxu0
    %v857 = vadd.f32 0.0, %v856
    %v858 = vpop.f32.mrb[0].mxu0
    %v859 = vpop.f32.mrb[0].mxu0
    %860 = vdwg.mxu0
    %861 = vmatprep.subr.bf16.mxu0 %v215
    %862 = vmatpush1.bf16.msra.mxu0 %v214
    %863 = vmatprep.subr.bf16.mxu0 %v219
    %864 = vmatpush1.bf16.msra.mxu0 %v218
    %865 = vmatprep.subr.bf16.mxu0 %v223
    %866 = vmatpush1.bf16.msra.mxu0 %v222
    %867 = vmatprep.subr.bf16.mxu0 %v227
    %868 = vmatpush1.bf16.msra.mxu0 %v226
    %869 = vmatprep.subr.bf16.mxu0 %v231
    %870 = vmatpush1.bf16.msra.mxu0 %v230
    %871 = vmatprep.subr.bf16.mxu0 %v235
    %872 = vmatpush1.bf16.msra.mxu0 %v234
    %873 = vmatprep.subr.bf16.mxu0 %v239
    %874 = vmatpush1.bf16.msra.mxu0 %v238
    %875 = vmatprep.subr.bf16.mxu0 %v243
    %876 = vmatpush1.bf16.msra.mxu0 %v242
    %877 = vmatprep.subr.bf16.mxu0 0
    %878 = vmatpush1.bf16.msra.mxu0 0
    %879 = vmatprep.subr.bf16.mxu0 0
    %880 = vmatpush1.bf16.msra.mxu0 0
    %881 = vmatprep.subr.bf16.mxu0 0
    %882 = vmatpush1.bf16.msra.mxu0 0
    %883 = vmatprep.subr.bf16.mxu0 0
    %884 = vmatpush1.bf16.msra.mxu0 0
    %885 = vmatprep.subr.bf16.mxu0 0
    %886 = vmatpush1.bf16.msra.mxu0 0
    %887 = vmatprep.subr.bf16.mxu0 0
    %888 = vmatpush1.bf16.msra.mxu0 0
    %889 = vmatprep.subr.bf16.mxu0 0
    %890 = vmatpush1.bf16.msra.mxu0 0
    %891 = vmatprep.subr.bf16.mxu0 0
    %892 = vmatpush1.bf16.msra.mxu0 0
    %893 = vmatprep.mubr.bf16.mxu0 0
    %894 = vmatmul.mubr.bf16.gmra.mrb[0].mxu0 %v819
    %v895 = vpop.f32.mrb[0].mxu0
    %v896 = vadd.f32 0.0, %v895
    %v897 = vpop.f32.mrb[0].mxu0
    %v898 = vadd.f32 0.0, %v897
    %v899 = vpop.f32.mrb[0].mxu0
    %v900 = vpop.f32.mrb[0].mxu0
    %901 = vdwg.mxu0
    %v906 = vcombine.low %v855, %v857
    %v907 = vcombine.low %v896, %v898
    %v909 = vunpack.c.l.s4 1966171168
    %v910 = vunpack.c.0.s8 %v909
    %v911 = vlaneseq
    %v912 = vshrl.u32 %v911, 7
    %v913 = vsub.s32 %v910, %v912
    %v914 = vrot.slane %v906, %v913
    %v916 = vunpack.c.l.s4 1966171168
    %v917 = vunpack.c.0.s8 %v916
    %v918 = vlaneseq
    %v919 = vshrl.u32 %v918, 7
    %v920 = vsub.s32 %v917, %v919
    %v921 = vrot.slane %v907, %v920
    %v922 = vcombine.low %v914, %v921
    %v924 = vunpack.c.l.s4 1966171168
    %v925 = vunpack.c.0.s8 %v924
    %v926 = vlaneseq
    %v927 = vshrl.u32 %v926, 7
    %v928 = vsub.s32 %v925, %v927
    %v929 = vrot.slane %v922, %v928
    %v931 = vadd.f32 %v818, %v929
    %v932 = vsub.f32 0.0, %v931
    %v933 = vmul.f32 %v932, 1.442695
    %v934 = vpow.pop %v933
    %v935 = vadd.f32 %v934, 1.0
    %v936 = vrcp.pop %v935
    %v938 = vrot.slane %v931, 3
    %v940 = vtanh.pop %v938
    %v942 = vrot.slane %v936, 1
    %v944 = vmul.f32 %v942, %v810
    %v945 = vmul.f32 %v936, %v940
    %v946 = vadd.f32 %v944, %v945
    %v947 = vtanh.pop %v946
    %v948 = vrot.slane %v936, 2
    %v950 = vmul.f32 %v948, %v947
    %s951 = sld [smem:[#allocation3 + $0x6]]
    %v952 = vstv %s951
    %v953 = vmul.f32 %v952, %v55
    %v954 = vadd.f32 %v953, %v58
    %v955 = vpack.c.bf16 %v950, %v950
    %956 = vmatprep.subr.bf16.mxu0 %v213
    %957 = vmatpush1.bf16.msra.mxu0 %v212
    %958 = vmatprep.subr.bf16.mxu0 %v217
    %959 = vmatpush1.bf16.msra.mxu0 %v216
    %960 = vmatprep.subr.bf16.mxu0 %v221
    %961 = vmatpush1.bf16.msra.mxu0 %v220
    %962 = vmatprep.subr.bf16.mxu0 %v225
    %963 = vmatpush1.bf16.msra.mxu0 %v224
    %964 = vmatprep.subr.bf16.mxu0 %v229
    %965 = vmatpush1.bf16.msra.mxu0 %v228
    %966 = vmatprep.subr.bf16.mxu0 %v233
    %967 = vmatpush1.bf16.msra.mxu0 %v232
    %968 = vmatprep.subr.bf16.mxu0 %v237
    %969 = vmatpush1.bf16.msra.mxu0 %v236
    %970 = vmatprep.subr.bf16.mxu0 %v241
    %971 = vmatpush1.bf16.msra.mxu0 %v240
    %972 = vmatprep.subr.bf16.mxu0 0
    %973 = vmatpush1.bf16.msra.mxu0 0
    %974 = vmatprep.subr.bf16.mxu0 0
    %975 = vmatpush1.bf16.msra.mxu0 0
    %976 = vmatprep.subr.bf16.mxu0 0
    %977 = vmatpush1.bf16.msra.mxu0 0
    %978 = vmatprep.subr.bf16.mxu0 0
    %979 = vmatpush1.bf16.msra.mxu0 0
    %980 = vmatprep.subr.bf16.mxu0 0
    %981 = vmatpush1.bf16.msra.mxu0 0
    %982 = vmatprep.subr.bf16.mxu0 0
    %983 = vmatpush1.bf16.msra.mxu0 0
    %984 = vmatprep.subr.bf16.mxu0 0
    %985 = vmatpush1.bf16.msra.mxu0 0
    %986 = vmatprep.subr.bf16.mxu0 0
    %987 = vmatpush1.bf16.msra.mxu0 0
    %988 = vmatprep.mubr.bf16.mxu0 0
    %989 = vmatmul.mubr.bf16.gmra.mrb[0].mxu0 %v955
    %v990 = vpop.f32.mrb[0].mxu0
    %v991 = vadd.f32 0.0, %v990
    %v992 = vpop.f32.mrb[0].mxu0
    %v993 = vadd.f32 0.0, %v992
    %v994 = vpop.f32.mrb[0].mxu0
    %v995 = vpop.f32.mrb[0].mxu0
    %996 = vdwg.mxu0
    %997 = vmatprep.subr.bf16.mxu0 %v215
    %998 = vmatpush1.bf16.msra.mxu0 %v214
    %999 = vmatprep.subr.bf16.mxu0 %v219
    %1000 = vmatpush1.bf16.msra.mxu0 %v218
    %1001 = vmatprep.subr.bf16.mxu0 %v223
    %1002 = vmatpush1.bf16.msra.mxu0 %v222
    %1003 = vmatprep.subr.bf16.mxu0 %v227
    %1004 = vmatpush1.bf16.msra.mxu0 %v226
    %1005 = vmatprep.subr.bf16.mxu0 %v231
    %1006 = vmatpush1.bf16.msra.mxu0 %v230
    %1007 = vmatprep.subr.bf16.mxu0 %v235
    %1008 = vmatpush1.bf16.msra.mxu0 %v234
    %1009 = vmatprep.subr.bf16.mxu0 %v239
    %1010 = vmatpush1.bf16.msra.mxu0 %v238
    %1011 = vmatprep.subr.bf16.mxu0 %v243
    %1012 = vmatpush1.bf16.msra.mxu0 %v242
    %1013 = vmatprep.subr.bf16.mxu0 0
    %1014 = vmatpush1.bf16.msra.mxu0 0
    %1015 = vmatprep.subr.bf16.mxu0 0
    %1016 = vmatpush1.bf16.msra.mxu0 0
    %1017 = vmatprep.subr.bf16.mxu0 0
    %1018 = vmatpush1.bf16.msra.mxu0 0
    %1019 = vmatprep.subr.bf16.mxu0 0
    %1020 = vmatpush1.bf16.msra.mxu0 0
    %1021 = vmatprep.subr.bf16.mxu0 0
    %1022 = vmatpush1.bf16.msra.mxu0 0
    %1023 = vmatprep.subr.bf16.mxu0 0
    %1024 = vmatpush1.bf16.msra.mxu0 0
    %1025 = vmatprep.subr.bf16.mxu0 0
    %1026 = vmatpush1.bf16.msra.mxu0 0
    %1027 = vmatprep.subr.bf16.mxu0 0
    %1028 = vmatpush1.bf16.msra.mxu0 0
    %1029 = vmatprep.mubr.bf16.mxu0 0
    %1030 = vmatmul.mubr.bf16.gmra.mrb[0].mxu0 %v955
    %v1031 = vpop.f32.mrb[0].mxu0
    %v1032 = vadd.f32 0.0, %v1031
    %v1033 = vpop.f32.mrb[0].mxu0
    %v1034 = vadd.f32 0.0, %v1033
    %v1035 = vpop.f32.mrb[0].mxu0
    %v1036 = vpop.f32.mrb[0].mxu0
    %1037 = vdwg.mxu0
    %v1042 = vcombine.low %v991, %v993
    %v1043 = vcombine.low %v1032, %v1034
    %v1045 = vunpack.c.l.s4 1966171168
    %v1046 = vunpack.c.0.s8 %v1045
    %v1047 = vlaneseq
    %v1048 = vshrl.u32 %v1047, 7
    %v1049 = vsub.s32 %v1046, %v1048
    %v1050 = vrot.slane %v1042, %v1049
    %v1052 = vunpack.c.l.s4 1966171168
    %v1053 = vunpack.c.0.s8 %v1052
    %v1054 = vlaneseq
    %v1055 = vshrl.u32 %v1054, 7
    %v1056 = vsub.s32 %v1053, %v1055
    %v1057 = vrot.slane %v1043, %v1056
    %v1058 = vcombine.low %v1050, %v1057
    %v1060 = vunpack.c.l.s4 1966171168
    %v1061 = vunpack.c.0.s8 %v1060
    %v1062 = vlaneseq
    %v1063 = vshrl.u32 %v1062, 7
    %v1064 = vsub.s32 %v1061, %v1063
    %v1065 = vrot.slane %v1058, %v1064
    %v1067 = vadd.f32 %v954, %v1065
    %v1068 = vsub.f32 0.0, %v1067
    %v1069 = vmul.f32 %v1068, 1.442695
    %v1070 = vpow.pop %v1069
    %v1071 = vadd.f32 %v1070, 1.0
    %v1072 = vrcp.pop %v1071
    %v1074 = vrot.slane %v1067, 3
    %v1076 = vtanh.pop %v1074
    %v1078 = vrot.slane %v1072, 1
    %v1080 = vmul.f32 %v1078, %v946
    %v1081 = vmul.f32 %v1072, %v1076
    %v1082 = vadd.f32 %v1080, %v1081
    %v1083 = vtanh.pop %v1082
    %v1084 = vrot.slane %v1072, 2
    %v1086 = vmul.f32 %v1084, %v1083
    %s1087 = sld [smem:[#allocation3 + $0x7]]
    %v1088 = vstv %s1087
    %v1089 = vmul.f32 %v1088, %v55
    %v1090 = vadd.f32 %v1089, %v58
    %v1091 = vpack.c.bf16 %v1086, %v1086
    %1092 = vmatprep.subr.bf16.mxu0 %v213
    %1093 = vmatpush1.bf16.msra.mxu0 %v212
    %1094 = vmatprep.subr.bf16.mxu0 %v217
    %1095 = vmatpush1.bf16.msra.mxu0 %v216
    %1096 = vmatprep.subr.bf16.mxu0 %v221
    %1097 = vmatpush1.bf16.msra.mxu0 %v220
    %1098 = vmatprep.subr.bf16.mxu0 %v225
    %1099 = vmatpush1.bf16.msra.mxu0 %v224
    %1100 = vmatprep.subr.bf16.mxu0 %v229
    %1101 = vmatpush1.bf16.msra.mxu0 %v228
    %1102 = vmatprep.subr.bf16.mxu0 %v233
    %1103 = vmatpush1.bf16.msra.mxu0 %v232
    %1104 = vmatprep.subr.bf16.mxu0 %v237
    %1105 = vmatpush1.bf16.msra.mxu0 %v236
    %1106 = vmatprep.subr.bf16.mxu0 %v241
    %1107 = vmatpush1.bf16.msra.mxu0 %v240
    %1108 = vmatprep.subr.bf16.mxu0 0
    %1109 = vmatpush1.bf16.msra.mxu0 0
    %1110 = vmatprep.subr.bf16.mxu0 0
    %1111 = vmatpush1.bf16.msra.mxu0 0
    %1112 = vmatprep.subr.bf16.mxu0 0
    %1113 = vmatpush1.bf16.msra.mxu0 0
    %1114 = vmatprep.subr.bf16.mxu0 0
    %1115 = vmatpush1.bf16.msra.mxu0 0
    %1116 = vmatprep.subr.bf16.mxu0 0
    %1117 = vmatpush1.bf16.msra.mxu0 0
    %1118 = vmatprep.subr.bf16.mxu0 0
    %1119 = vmatpush1.bf16.msra.mxu0 0
    %1120 = vmatprep.subr.bf16.mxu0 0
    %1121 = vmatpush1.bf16.msra.mxu0 0
    %1122 = vmatprep.subr.bf16.mxu0 0
    %1123 = vmatpush1.bf16.msra.mxu0 0
    %1124 = vmatprep.mubr.bf16.mxu0 0
    %1125 = vmatmul.mubr.bf16.gmra.mrb[0].mxu0 %v1091
    %v1126 = vpop.f32.mrb[0].mxu0
    %v1127 = vadd.f32 0.0, %v1126
    %v1128 = vpop.f32.mrb[0].mxu0
    %v1129 = vadd.f32 0.0, %v1128
    %v1130 = vpop.f32.mrb[0].mxu0
    %v1131 = vpop.f32.mrb[0].mxu0
    %1132 = vdwg.mxu0
    %1133 = vmatprep.subr.bf16.mxu0 %v215
    %1134 = vmatpush1.bf16.msra.mxu0 %v214
    %1135 = vmatprep.subr.bf16.mxu0 %v219
    %1136 = vmatpush1.bf16.msra.mxu0 %v218
    %1137 = vmatprep.subr.bf16.mxu0 %v223
    %1138 = vmatpush1.bf16.msra.mxu0 %v222
    %1139 = vmatprep.subr.bf16.mxu0 %v227
    %1140 = vmatpush1.bf16.msra.mxu0 %v226
    %1141 = vmatprep.subr.bf16.mxu0 %v231
    %1142 = vmatpush1.bf16.msra.mxu0 %v230
    %1143 = vmatprep.subr.bf16.mxu0 %v235
    %1144 = vmatpush1.bf16.msra.mxu0 %v234
    %1145 = vmatprep.subr.bf16.mxu0 %v239
    %1146 = vmatpush1.bf16.msra.mxu0 %v238
    %1147 = vmatprep.subr.bf16.mxu0 %v243
    %1148 = vmatpush1.bf16.msra.mxu0 %v242
    %1149 = vmatprep.subr.bf16.mxu0 0
    %1150 = vmatpush1.bf16.msra.mxu0 0
    %1151 = vmatprep.subr.bf16.mxu0 0
    %1152 = vmatpush1.bf16.msra.mxu0 0
    %1153 = vmatprep.subr.bf16.mxu0 0
    %1154 = vmatpush1.bf16.msra.mxu0 0
    %1155 = vmatprep.subr.bf16.mxu0 0
    %1156 = vmatpush1.bf16.msra.mxu0 0
    %1157 = vmatprep.subr.bf16.mxu0 0
    %1158 = vmatpush1.bf16.msra.mxu0 0
    %1159 = vmatprep.subr.bf16.mxu0 0
    %1160 = vmatpush1.bf16.msra.mxu0 0
    %1161 = vmatprep.subr.bf16.mxu0 0
    %1162 = vmatpush1.bf16.msra.mxu0 0
    %1163 = vmatprep.subr.bf16.mxu0 0
    %1164 = vmatpush1.bf16.msra.mxu0 0
    %1165 = vmatprep.mubr.bf16.mxu0 0
    %1166 = vmatmul.mubr.bf16.gmra.mrb[0].mxu0 %v1091
    %v1167 = vpop.f32.mrb[0].mxu0
    %v1168 = vadd.f32 0.0, %v1167
    %v1169 = vpop.f32.mrb[0].mxu0
    %v1170 = vadd.f32 0.0, %v1169
    %v1171 = vpop.f32.mrb[0].mxu0
    %v1172 = vpop.f32.mrb[0].mxu0
    %1173 = vdwg.mxu0
    %v1178 = vcombine.low %v1127, %v1129
    %v1179 = vcombine.low %v1168, %v1170
    %v1181 = vunpack.c.l.s4 1966171168
    %v1182 = vunpack.c.0.s8 %v1181
    %v1183 = vlaneseq
    %v1184 = vshrl.u32 %v1183, 7
    %v1185 = vsub.s32 %v1182, %v1184
    %v1186 = vrot.slane %v1178, %v1185
    %v1188 = vunpack.c.l.s4 1966171168
    %v1189 = vunpack.c.0.s8 %v1188
    %v1190 = vlaneseq
    %v1191 = vshrl.u32 %v1190, 7
    %v1192 = vsub.s32 %v1189, %v1191
    %v1193 = vrot.slane %v1179, %v1192
    %v1194 = vcombine.low %v1186, %v1193
    %v1196 = vunpack.c.l.s4 1966171168
    %v1197 = vunpack.c.0.s8 %v1196
    %v1198 = vlaneseq
    %v1199 = vshrl.u32 %v1198, 7
    %v1200 = vsub.s32 %v1197, %v1199
    %v1201 = vrot.slane %v1194, %v1200
    %v1203 = vadd.f32 %v1090, %v1201
    %v1204 = vsub.f32 0.0, %v1203
    %v1205 = vmul.f32 %v1204, 1.442695
    %v1206 = vpow.pop %v1205
    %v1207 = vadd.f32 %v1206, 1.0
    %v1208 = vrcp.pop %v1207
    %v1210 = vrot.slane %v1203, 3
    %v1212 = vtanh.pop %v1210
    %v1214 = vrot.slane %v1208, 1
    %v1216 = vmul.f32 %v1214, %v1082
    %v1217 = vmul.f32 %v1208, %v1212
    %v1218 = vadd.f32 %v1216, %v1217
    %v1219 = vtanh.pop %v1218
    %v1220 = vrot.slane %v1208, 2
    %v1222 = vmul.f32 %v1220, %v1219
    %v1223 = vld [vmem:[%s4] sm:$0x1]
    %v1224 = vmul.f32 %v1222, %v1223
    %vm1225 = vcmask 1040384
    %v1226 = vsel %vm1225, %v1224, 0.0
    %1227 = vadd.xlane.f32.xlu0 %v1226
    %v1228 = vpop.xlane.xlu0 %1227
    %v1229 = vld [vmem:[#allocation2] sm:$0x1]
    %v1230 = vadd.f32 %v1228, %v1229
    %vm1231 = vcmask 0
    %1232 = vst.msk [vmem:[#allocation8] sm:$0x1] %vm1231, %v1230
    // Predicated region
    $region34: #{tpu_custom_call.1} parent=1 // pred_check
      _
    $region35: #{tpu_custom_call.1} parent=1 // pred_check_branch
      %1234 = sbr.rel (0) target = $region37
    $region36: #{tpu_custom_call.1} parent=1 // pred_region
      %s1236 = ssub.s32 16, 16
      %1237 = vsyncadd [#allocation5], %s1236
      %s1239 = sshll.u32 [#allocation8], 4
      %s1240 = int_to_ptr.vmem [resolvable:$true] %s1239
      %1242 = dma.vmem_to_hbm [thread:$0]  %s1240, 16, %s6, [#allocation5]
    $region37: #{tpu_custom_call.1} parent=1 // pred_fallthru
      _
    // Predicated region
    $region38: #{tpu_custom_call.1} parent=1 // pred_check
      _
    $region39: #{tpu_custom_call.1} parent=1 // pred_check_branch
      %1244 = sbr.rel (0) target = $region41
    $region40: #{tpu_custom_call.1} parent=1 // pred_region
      %1245 = dma.done [#allocation5], 16
    $region41: #{tpu_custom_call.1} parent=1 // pred_fallthru
      _
    %1246 = vsyncpa [#allocation4], 1
    %1247 = vsyncpa [#allocation5], 1
    %1248 = vsyncpa [#allocation6], 1

</llo_original>
